<compile_context>
chip_gen: v7x
topology: tpu7x:2x2x1
jax: 0.10.0
libtpu: 0.0.40
codegen_flags: <defaults>
</compile_context>

<pallas_src>
import jax
import jax.numpy as jnp
from jax.experimental import pallas as pl
from jax.experimental.pallas import tpu as pltpu


def _round_up(x: int, m: int) -> int:
    return ((x + m - 1) // m) * m


# Maps reference-activation name -> its inverse (applied inside the kernel).
_INVERSE_ACTIVATIONS = {
    "identity": lambda h: h,
    # inverse of leaky_relu(negative_slope=0.5) is leaky_relu(slope=2.0)
    "leaky_relu0p5": lambda h: jnp.where(h >= 0, h, 2.0 * h),
}


def _make_fused_kernel(num_groups: int, act_names: list[str]):
    """One fused kernel for the whole reversed chain (one row-tile per step).

    refs layout: x, A_0..A_{G-1}, c_0..c_{G-1}, out
      x   : (block_n, F_in)     activations, natural row-major layout
      A_g : (F_in_g, F_out_g)   composed pinv(W).T products (resident in VMEM)
      c_g : (1, F_out_g)        folded post-matmul bias rows
      out : (block_n, F_out)
    """
    inv_acts = [_INVERSE_ACTIVATIONS[n] for n in act_names]

    def kernel(*refs):
        x_ref = refs[0]
        a_refs = refs[1 : 1 + num_groups]
        c_refs = refs[1 + num_groups : 1 + 2 * num_groups]
        o_ref = refs[1 + 2 * num_groups]

        h = x_ref[...].astype(jnp.float32)        # f32 accumulation throughout
        for g in range(num_groups):               # unrolled, static
            h = inv_acts[g](h)                    # inverse activation (VPU)
            h = jnp.dot(h, a_refs[g][...],        # (bn,Fi)@(Fi,Fo) on MXU
                        preferred_element_type=jnp.float32)
            h = h + c_refs[g][...]                # folded post-matmul bias
        o_ref[...] = h.astype(o_ref.dtype)

    return kernel


class PInvMLPPallas:
    """Pseudo-inverse of a reference MLP (list of Linear layers + activations)."""

    def __init__(self, ref_weights, ref_biases, ref_activations, *, block_n=2048):
        assert block_n % 16 == 0, "row tile must be a multiple of 16"
        self._block_n = block_n

        # Reverse layer order; fold biases post-matmul; pre-compose runs of
        # layers whose inverse activation is identity (only nonlinearities
        # force a matmul boundary).  All of this is one-time parameter setup.
        groups: list[tuple[str, jax.Array, jax.Array]] = []
        for w, b, act in zip(ref_weights[::-1], ref_biases[::-1],
                             ref_activations[::-1]):
            if act not in _INVERSE_ACTIVATIONS:
                raise ValueError(f"unsupported activation for inverse: {act}")
            a = jnp.linalg.pinv(jnp.asarray(w, jnp.float32)).T   # (out_i, in_i)
            if b is not None:
                c = (-jnp.asarray(b, jnp.float32)) @ a           # (in_i,)
            else:
                c = jnp.zeros((a.shape[1],), jnp.float32)
            c = c.reshape(1, -1)
            if act == "identity" and groups:
                prev_act, prev_a, prev_c = groups[-1]
                groups[-1] = (prev_act, prev_a @ a, prev_c @ a + c)
            else:
                groups.append((act, a, c))

        self._acts = [g[0] for g in groups]
        self._mats = [g[1] for g in groups]
        self._biases = [g[2] for g in groups]
        self._f_in = int(self._mats[0].shape[0])
        self._f_out = int(self._mats[-1].shape[1])
        self._kernel = _make_fused_kernel(len(groups), self._acts)

    def __call__(self, h: jax.Array) -> jax.Array:
        n, f_in = h.shape
        assert f_in == self._f_in, (f_in, self._f_in)

        # Row-tile size: as large as possible (amortizes the ~0.35us/step
        # pipeline overhead) but capped at ceil(N/2) so the parallel grid has
        # >= 2 tiles and both v7x TensorCores are used.  Multiple of 16 so the
        # (8,128)/(16,128) block constraints hold for f32 and bf16 alike.
        bn = min(self._block_n, _round_up(n, 16))
        if n > 16:
            bn = min(bn, _round_up(pl.cdiv(n, 2), 16))
        bn = max(bn, 16)
        n_tiles = pl.cdiv(n, bn)   # ragged last tile handled by Pallas masking

        in_specs = [pl.BlockSpec((bn, self._f_in), lambda i: (i, 0))]
        # Tiny (<=32x32) matrices / bias rows: full blocks, VMEM resident.
        in_specs += [pl.BlockSpec(a.shape, lambda i: (0, 0)) for a in self._mats]
        in_specs += [pl.BlockSpec(c.shape, lambda i: (0, 0)) for c in self._biases]
        out_specs = pl.BlockSpec((bn, self._f_out), lambda i: (i, 0))

        flops = sum(2 * a.shape[0] * a.shape[1] * n for a in self._mats)
        bytes_accessed = (
            h.size * h.dtype.itemsize
            + n * self._f_out * h.dtype.itemsize
            + sum(4 * a.size for a in self._mats)
            + sum(4 * c.size for c in self._biases)
        )

        return pl.pallas_call(
            self._kernel,
            out_shape=jax.ShapeDtypeStruct((n, self._f_out), h.dtype),
            grid_spec=pl.GridSpec(
                grid=(n_tiles,), in_specs=in_specs, out_specs=out_specs
            ),
            compiler_params=pltpu.CompilerParams(
                dimension_semantics=("parallel",),
                # Explicit limit (v5e's default is only 16 MiB); block_n up to
                # ~8192 fits if this is raised accordingly.
                vmem_limit_bytes=32 * 1024 * 1024,
            ),
            cost_estimate=pl.CostEstimate(
                flops=flops, transcendentals=0, bytes_accessed=bytes_accessed
            ),
        )(h, *self._mats, *self._biases)


# ----------------------------------------------------------------------------
# Demo / smoke test
# ----------------------------------------------------------------------------
if __name__ == "__main__":
    key = jax.random.PRNGKey(0)

    # Reference MLP:  8 -> 32 -> 16  (weights W_i: (out, in)).
    nodes = [8, 32, 16]
    activations = ["identity", "leaky_relu0p5"]

    keys = jax.random.split(key, 2 * (len(nodes) - 1) + 1)
    ref_weights, ref_biases = [], []
    for li in range(len(nodes) - 1):
        d_in, d_out = nodes[li], nodes[li + 1]
        w = jax.random.normal(keys[2 * li], (d_out, d_in), jnp.float32) * 0.3
        b = jax.random.normal(keys[2 * li + 1], (d_out,), jnp.float32) * 0.1
        ref_weights.append(w)
        ref_biases.append(b)

    # PInvMLP consumes the reference MLP's OUTPUT space: features = nodes[-1].
    # 1000 samples -> 2 row-tiles (both v7x TensorCores busy), the second one
    # ragged, exercising the in-kernel padding/masking path.
    n_samples = 1000
    x = jax.random.normal(keys[-1], (n_samples, nodes[-1]), jnp.float32)

    pinv_mlp = PInvMLPPallas(ref_weights, ref_biases, activations)
    out = jax.block_until_ready(pinv_mlp(x))

    # Pure-JAX reference of the exact PyTorch semantics for a sanity check.
    def ref_forward(h):
        for w, b, act in zip(ref_weights[::-1], ref_biases[::-1],
                             activations[::-1]):
            h = _INVERSE_ACTIVATIONS[act](h)            # inverse activation
            h = (h + (-b)) @ jnp.linalg.pinv(w).T       # PInvLinear
        return h

    ref = jax.block_until_ready(ref_forward(x))
    assert out.shape == (n_samples, nodes[0]), out.shape
    max_err = float(jnp.max(jnp.abs(out - ref)))
    assert jnp.allclose(out, ref, atol=1e-3, rtol=1e-3), max_err

    print("KERNEL_OK")
</pallas_src>

<mosaic_0001>
module attributes {stable_mosaic.version = 11 : i64} {
  func.func @kernel(%arg0: i32, %arg1: memref<512x16xf32, #tpu.memory_space<vmem>>, %arg2: memref<16x8xf32, #tpu.memory_space<vmem>>, %arg3: memref<1x8xf32, #tpu.memory_space<vmem>>, %arg4: memref<512x8xf32, #tpu.memory_space<vmem>>) attributes {dimension_semantics = [#tpu.dimension_semantics<parallel>], iteration_bounds = array<i64: 2>, scalar_prefetch = 0 : i64, scratch_operands = 0 : i64, tpu.core_type = #tpu.core_type<tc>, window_params = [{transform_indices = @transform_0, window_bounds = array<i64: 512, 16>}, {pipeline_mode = #tpu.pipeline_mode<synchronous>, transform_indices = @transform_1, window_bounds = array<i64: 16, 8>}, {pipeline_mode = #tpu.pipeline_mode<synchronous>, transform_indices = @transform_2, window_bounds = array<i64: 1, 8>}, {transform_indices = @transform_3, window_bounds = array<i64: 512, 8>}]} {
    %c0 = arith.constant 0 : index
    %c0_0 = arith.constant 0 : index
    %0 = vector.load %arg1[%c0, %c0_0] : memref<512x16xf32, #tpu.memory_space<vmem>>, vector<512x16xf32>
    %cst = arith.constant 0.000000e+00 : f32
    %1 = vector.broadcast %cst : f32 to vector<512x16xf32>
    %2 = arith.cmpf oge, %0, %1 : vector<512x16xf32>
    %cst_1 = arith.constant 2.000000e+00 : f32
    %3 = vector.broadcast %cst_1 : f32 to vector<512x16xf32>
    %4 = arith.mulf %3, %0 : vector<512x16xf32>
    %5 = arith.select %2, %0, %4 : vector<512x16xi1>, vector<512x16xf32>
    %c0_2 = arith.constant 0 : index
    %c0_3 = arith.constant 0 : index
    %6 = vector.load %arg2[%c0_2, %c0_3] : memref<16x8xf32, #tpu.memory_space<vmem>>, vector<16x8xf32>
    %cst_4 = arith.constant dense<0.000000e+00> : vector<512x8xf32>
    %7 = tpu.matmul %5, %6, %cst_4 {dimension_numbers = #tpu.dot_dimension_numbers<[1], [0], [0], [1], [0, 0, 1, 1], [], []>} : vector<512x16xf32>, vector<16x8xf32>, vector<512x8xf32> -> vector<512x8xf32>
    %c0_5 = arith.constant 0 : index
    %c0_6 = arith.constant 0 : index
    %8 = vector.load %arg3[%c0_5, %c0_6] : memref<1x8xf32, #tpu.memory_space<vmem>>, vector<1x8xf32>
    %9 = vector.broadcast %8 : vector<1x8xf32> to vector<512x8xf32>
    %10 = arith.addf %7, %9 : vector<512x8xf32>
    %c0_7 = arith.constant 0 : index
    %c0_8 = arith.constant 0 : index
    %11 = vector.load %arg4[%c0_7, %c0_8] : memref<512x8xf32, #tpu.memory_space<vmem>>, vector<512x8xf32>
    tpu.vector_store %arg4[%c0_7, %c0_8], %10 {strides = array<i32>} : memref<512x8xf32, #tpu.memory_space<vmem>>, vector<512x8xf32>,
    return
  }
  func.func @transform_0(%arg0: i32) -> (i32, i32) {
    %c0_i32 = arith.constant 0 : i32
    %c0_i32_0 = arith.constant 0 : i32
    return %arg0, %c0_i32 : i32, i32
  }
  func.func @transform_1(%arg0: i32) -> (i32, i32) {
    %c0_i32 = arith.constant 0 : i32
    %c0_i32_0 = arith.constant 0 : i32
    %c0_i32_1 = arith.constant 0 : i32
    return %c0_i32, %c0_i32_0 : i32, i32
  }
  func.func @transform_2(%arg0: i32) -> (i32, i32) {
    %c0_i32 = arith.constant 0 : i32
    %c0_i32_0 = arith.constant 0 : i32
    %c0_i32_1 = arith.constant 0 : i32
    return %c0_i32, %c0_i32_0 : i32, i32
  }
  func.func @transform_3(%arg0: i32) -> (i32, i32) {
    %c0_i32 = arith.constant 0 : i32
    %c0_i32_0 = arith.constant 0 : i32
    return %arg0, %c0_i32 : i32, i32
  }
}

</mosaic_0001>

<llo_original>
// kernel: tpu_custom_call.1
$region0: #{tpu_custom_call.1}
  #allocation0 [shape = 'u32[]', space=smem, size = 0x4, offset = 0x4, fixed_abs, tag = 'smem constant byte address 0x4 - core index']
  #allocation1 [shape = 'u32[144,128]{1,0:T(1,128)}', space=vmem, size = 0x12000, scoped, tag = 'internal scratch']
  %s0 = inlined_call_operand.vmem [shape: f32[1000,16], index: 0, kind: input, shape index: {}]
  %s1 = inlined_call_operand.vmem [shape: f32[16,8], index: 1, kind: input, shape index: {}]
  %s2 = inlined_call_operand.vmem [shape: f32[1,8], index: 2, kind: input, shape index: {}]
  %s3 = inlined_call_operand.vmem [shape: f32[1000,8], index: 3, kind: output, shape index: {}]
  %s4 = sld [smem:[#allocation0]]
  $region93: #{tpu_custom_call.1} parent=0
    _
  %s6 = ssub.s32 1, %s4
  %s7 = scalar_select 0, %s6, %s4
  $region1: #{tpu_custom_call.1} parent=0
    #allocation2 [shape = 'u8[524288]{0}', space=vmem, size = 0x80000, scoped, tag = 'output window, operand 0']
    loop: start=0, step=1, limit=4
    $region2: #{tpu_custom_call.1} parent=1 // loop_pre_header
      _
    $region3: #{tpu_custom_call.1} parent=1 // loop_header
      %s9 = sphi 0, %s13
      %p10 = scmp.ge.s32.totalorder %s9, 4
      %s19 = sphi 0, %s21
      %s22 = sphi 0, %s19
      %s23 = sphi 0, %s22
      %s39 = sphi 0, %s23
      %s43 = sphi 0, %s43
      %s45 = sphi 0, %s43
      %s46 = sphi 0, %s45
      %s60 = sphi 0, %s46
      %s64 = sphi 0, %s64
      %s66 = sphi 0, %s64
      %s67 = sphi 0, %s66
      %s81 = sphi 0, %s67
      %s87 = sphi 0, %s89
      %s90 = sphi 0, %s87
      %s91 = sphi 0, %s90
      %s107 = sphi 0, %s91
    $region4: #{tpu_custom_call.1} parent=1 // loop_header_branch
      %12 = sbr.rel (%p10) target = $region8
    $region5: #{tpu_custom_call.1} parent=1 // loop_body
      %s14 = ssub.s32 %s9, 1
      %s15 = ssub.s32 %s9, 2
      %s16 = sadd.s32 %s9, 1
      %s17 = ssub.s32 %s9, %s16
      %p18 = scmp.eq.s32.totalorder %s17, 0
      %s20 = sadd.s32 %s19, 1
      %s21 = scalar_select %p18, %s19, %s20
      %p24 = pneg %p18
      %p25 = scmp.eq.s32.totalorder %s9, 1
      %p26 = por %p24, %p25
      %p27 = scmp.ne.s32.totalorder %s19, %s22
      %p28 = scmp.eq.s32.totalorder %s9, 0
      %p29 = por %p27, %p28
      %p30 = scmp.ne.s32.totalorder %s19, %s22
      %p31 = scmp.eq.s32.totalorder %s14, 1
      %p32 = por %p30, %p31
      %p33 = scmp.ne.s32.totalorder %s22, %s23
      %p34 = scmp.eq.s32.totalorder %s14, 0
      %p35 = por %p33, %p34
      %p36 = scmp.ne.s32.totalorder %s22, %s23
      %p37 = scmp.eq.s32.totalorder %s15, 1
      %p38 = por %p36, %p37
      %p40 = scmp.ne.s32.totalorder %s23, %s39
      %p41 = scmp.eq.s32.totalorder %s15, 0
      %p42 = por %p40, %p41
      %s44 = sadd.s32 %s43, 1
      %p47 = scmp.eq.s32.totalorder %s9, 1
      %p48 = scmp.ne.s32.totalorder %s43, %s45
      %p49 = scmp.eq.s32.totalorder %s9, 0
      %p50 = por %p48, %p49
      %p51 = scmp.ne.s32.totalorder %s43, %s45
      %p52 = scmp.eq.s32.totalorder %s14, 1
      %p53 = por %p51, %p52
      %p54 = scmp.ne.s32.totalorder %s45, %s46
      %p55 = scmp.eq.s32.totalorder %s14, 0
      %p56 = por %p54, %p55
      %p57 = scmp.ne.s32.totalorder %s45, %s46
      %p58 = scmp.eq.s32.totalorder %s15, 1
      %p59 = por %p57, %p58
      %p61 = scmp.ne.s32.totalorder %s46, %s60
      %p62 = scmp.eq.s32.totalorder %s15, 0
      %p63 = por %p61, %p62
      %s65 = sadd.s32 %s64, 1
      %p68 = scmp.eq.s32.totalorder %s9, 1
      %p69 = scmp.ne.s32.totalorder %s64, %s66
      %p70 = scmp.eq.s32.totalorder %s9, 0
      %p71 = por %p69, %p70
      %p72 = scmp.ne.s32.totalorder %s64, %s66
      %p73 = scmp.eq.s32.totalorder %s14, 1
      %p74 = por %p72, %p73
      %p75 = scmp.ne.s32.totalorder %s66, %s67
      %p76 = scmp.eq.s32.totalorder %s14, 0
      %p77 = por %p75, %p76
      %p78 = scmp.ne.s32.totalorder %s66, %s67
      %p79 = scmp.eq.s32.totalorder %s15, 1
      %p80 = por %p78, %p79
      %p82 = scmp.ne.s32.totalorder %s67, %s81
      %p83 = scmp.eq.s32.totalorder %s15, 0
      %p84 = por %p82, %p83
      %s85 = ssub.s32 %s9, %s16
      %p86 = scmp.eq.s32.totalorder %s85, 0
      %s88 = sadd.s32 %s87, 1
      %s89 = scalar_select %p86, %s87, %s88
      %p92 = pneg %p86
      %p93 = scmp.eq.s32.totalorder %s9, 1
      %p94 = por %p92, %p93
      %p95 = scmp.ne.s32.totalorder %s87, %s90
      %p96 = scmp.eq.s32.totalorder %s9, 0
      %p97 = por %p95, %p96
      %p98 = scmp.ne.s32.totalorder %s87, %s90
      %p99 = scmp.eq.s32.totalorder %s14, 1
      %p100 = por %p98, %p99
      %p101 = scmp.ne.s32.totalorder %s90, %s91
      %p102 = scmp.eq.s32.totalorder %s14, 0
      %p103 = por %p101, %p102
      %p104 = scmp.ne.s32.totalorder %s90, %s91
      %p105 = scmp.eq.s32.totalorder %s15, 1
      %p106 = por %p104, %p105
      %p108 = scmp.ne.s32.totalorder %s91, %s107
      %p109 = scmp.eq.s32.totalorder %s15, 0
      %p110 = por %p108, %p109
      %p111 = scmp.le.s32.totalorder 1, %s9
      %p112 = scmp.lt.s32.totalorder %s9, 3
      %p113 = pnand %p111, %p112
      %p114 = pneg %p113
      // Predicated region
      $region9: #{tpu_custom_call.1} parent=5 // pred_check
        _
      $region10: #{tpu_custom_call.1} parent=5 // pred_check_branch
        %116 = sbr.rel (%p113) target = $region12
      $region11: #{tpu_custom_call.1} parent=5 // pred_region
        %s117 = ssub.s32 %s9, 1
        // Predicated region
        $region13: #{tpu_custom_call.1} parent=11 // pred_check
          %p118 = pneg %p56
        $region14: #{tpu_custom_call.1} parent=11 // pred_check_branch
          %120 = sbr.rel (%p118) target = $region16
        $region15: #{tpu_custom_call.1} parent=11 // pred_region
          _
        $region16: #{tpu_custom_call.1} parent=11 // pred_fallthru
          _
        // Predicated region
        $region17: #{tpu_custom_call.1} parent=11 // pred_check
          %p121 = pneg %p77
        $region18: #{tpu_custom_call.1} parent=11 // pred_check_branch
          %123 = sbr.rel (%p121) target = $region20
        $region19: #{tpu_custom_call.1} parent=11 // pred_region
          _
        $region20: #{tpu_custom_call.1} parent=11 // pred_fallthru
          _
      $region12: #{tpu_custom_call.1} parent=5 // pred_fallthru
        _
      %p124 = scmp.lt.s32.totalorder %s9, 2
      // Predicated region
      $region21: #{tpu_custom_call.1} parent=5 // pred_check
        %p125 = pneg %p124
      $region22: #{tpu_custom_call.1} parent=5 // pred_check_branch
        %127 = sbr.rel (%p125) target = $region24
      $region23: #{tpu_custom_call.1} parent=5 // pred_region
        // Predicated region
        $region25: #{tpu_custom_call.1} parent=23 // pred_check
          %p128 = pneg %p29
        $region26: #{tpu_custom_call.1} parent=23 // pred_check_branch
          %130 = sbr.rel (%p128) target = $region28
        $region27: #{tpu_custom_call.1} parent=23 // pred_region
          %s131 = smul.u32 64, %s9
          %s132 = ssub.s32 125, %s131
          %p133 = scmp.lt.s32.totalorder %s132, 64
          %s134 = scalar_select %p133, %s132, 64
          %s135 = smul.u32 128, %s134
          %p136 = scmp.lt.s32.totalorder %s131, 124
          %s137 = scalar_select %p136, %s131, 124
          %s138 = smul.addr %s137, 8
          %s139 = scalar_lea.vmem %s0, %s138
          %s140 = smul.u32 64, %s9
          %s141 = ssub.s32 125, %s140
          %p142 = scmp.lt.s32.totalorder %s141, 64
          %s143 = scalar_select %p142, %s141, 64
          %s144 = smul.u32 128, %s143
        $region28: #{tpu_custom_call.1} parent=23 // pred_fallthru
          _
      $region24: #{tpu_custom_call.1} parent=5 // pred_fallthru
        _
      %p145 = scmp.le.s32.totalorder 1, %s9
      %p146 = scmp.lt.s32.totalorder %s9, 3
      %p147 = pnand %p145, %p146
      %p148 = pneg %p147
      // Predicated region
      $region29: #{tpu_custom_call.1} parent=5 // pred_check
        _
      $region30: #{tpu_custom_call.1} parent=5 // pred_check_branch
        %150 = sbr.rel (%p147) target = $region32
      $region31: #{tpu_custom_call.1} parent=5 // pred_region
        %s151 = ssub.s32 %s9, 1
        %s152 = smul.u32 64, %s14
        %s153 = ssub.s32 125, %s152
        %p154 = scmp.lt.s32.totalorder %s153, 64
        %s155 = scalar_select %p154, %s153, 64
        %s156 = smul.u32 128, %s155
        %p157 = scmp.lt.s32.totalorder %s152, 124
        %s158 = scalar_select %p157, %s152, 124
        %s159 = smul.addr %s158, 8
        %s160 = scalar_lea.vmem %s0, %s159
        %p161 = pneg %p35
        %p162 = pneg %p32
        %p163 = pneg %p56
        %p164 = pneg %p53
        %p165 = pneg %p77
        %p166 = pneg %p74
        %p167 = pneg %p103
        %p168 = pneg %p100
        %s169 = sand.u32 %s90, 1
        %s170 = sand.u32 %s90, 1
        %s171 = smul.addr %s170, 512
        %s172 = scalar_lea.vmem [#allocation2], %s171
        %s173 = smul.u32 64, %s14
        %s174 = ssub.s32 125, %s173
        %p175 = scmp.lt.s32.totalorder %s174, 64
        %s176 = scalar_select %p175, %s174, 64
        %s177 = smul.u32 128, %s176
        %p178 = scmp.lt.s32.totalorder %s173, 124
        %s179 = scalar_select %p178, %s173, 124
        %s180 = smul.addr %s179, 8
        %s181 = scalar_lea.vmem %s0, %s180
        %s182 = smul.u32 64, %s14
        %s183 = ssub.s32 125, %s182
        %p184 = scmp.lt.s32.totalorder %s183, 64
        %s185 = scalar_select %p184, %s183, 64
        %s186 = smul.u32 128, %s185
        %s187 = smul.u32 64, %s14
        %s188 = ssub.s32 125, %s187
        %p189 = scmp.lt.s32.totalorder %s188, 64
        %s190 = scalar_select %p189, %s188, 64
        %s191 = smul.u32 128, %s190
        %v192 = vld [vmem:[%s181] sm:$0xff]
        %v193 = vld [vmem:[%s181 + $0x8] sm:$0xff]
        %v194 = vld [vmem:[%s181 + $0x10] sm:$0xff]
        %v195 = vld [vmem:[%s181 + $0x18] sm:$0xff]
        %v196 = vld [vmem:[%s181 + $0x20] sm:$0xff]
        %v197 = vld [vmem:[%s181 + $0x28] sm:$0xff]
        %v198 = vld [vmem:[%s181 + $0x30] sm:$0xff]
        %v199 = vld [vmem:[%s181 + $0x38] sm:$0xff]
        %v200 = vld [vmem:[%s181 + $0x40] sm:$0xff]
        %v201 = vld [vmem:[%s181 + $0x48] sm:$0xff]
        %v202 = vld [vmem:[%s181 + $0x50] sm:$0xff]
        %v203 = vld [vmem:[%s181 + $0x58] sm:$0xff]
        %v204 = vld [vmem:[%s181 + $0x60] sm:$0xff]
        %v205 = vld [vmem:[%s181 + $0x68] sm:$0xff]
        %v206 = vld [vmem:[%s181 + $0x70] sm:$0xff]
        %v207 = vld [vmem:[%s181 + $0x78] sm:$0xff]
        %v208 = vld [vmem:[%s181 + $0x80] sm:$0xff]
        %v209 = vld [vmem:[%s181 + $0x88] sm:$0xff]
        %v210 = vld [vmem:[%s181 + $0x90] sm:$0xff]
        %v211 = vld [vmem:[%s181 + $0x98] sm:$0xff]
        %v212 = vld [vmem:[%s181 + $0xa0] sm:$0xff]
        %v213 = vld [vmem:[%s181 + $0xa8] sm:$0xff]
        %v214 = vld [vmem:[%s181 + $0xb0] sm:$0xff]
        %v215 = vld [vmem:[%s181 + $0xb8] sm:$0xff]
        %v216 = vld [vmem:[%s181 + $0xc0] sm:$0xff]
        %v217 = vld [vmem:[%s181 + $0xc8] sm:$0xff]
        %v218 = vld [vmem:[%s181 + $0xd0] sm:$0xff]
        %v219 = vld [vmem:[%s181 + $0xd8] sm:$0xff]
        %v220 = vld [vmem:[%s181 + $0xe0] sm:$0xff]
        %v221 = vld [vmem:[%s181 + $0xe8] sm:$0xff]
        %v222 = vld [vmem:[%s181 + $0xf0] sm:$0xff]
        %v223 = vld [vmem:[%s181 + $0xf8] sm:$0xff]
        %v224 = vld [vmem:[%s181 + $0x100] sm:$0xff]
        %v225 = vld [vmem:[%s181 + $0x108] sm:$0xff]
        %v226 = vld [vmem:[%s181 + $0x110] sm:$0xff]
        %v227 = vld [vmem:[%s181 + $0x118] sm:$0xff]
        %v228 = vld [vmem:[%s181 + $0x120] sm:$0xff]
        %v229 = vld [vmem:[%s181 + $0x128] sm:$0xff]
        %v230 = vld [vmem:[%s181 + $0x130] sm:$0xff]
        %v231 = vld [vmem:[%s181 + $0x138] sm:$0xff]
        %v232 = vld [vmem:[%s181 + $0x140] sm:$0xff]
        %v233 = vld [vmem:[%s181 + $0x148] sm:$0xff]
        %v234 = vld [vmem:[%s181 + $0x150] sm:$0xff]
        %v235 = vld [vmem:[%s181 + $0x158] sm:$0xff]
        %v236 = vld [vmem:[%s181 + $0x160] sm:$0xff]
        %v237 = vld [vmem:[%s181 + $0x168] sm:$0xff]
        %v238 = vld [vmem:[%s181 + $0x170] sm:$0xff]
        %v239 = vld [vmem:[%s181 + $0x178] sm:$0xff]
        %v240 = vld [vmem:[%s181 + $0x180] sm:$0xff]
        %v241 = vld [vmem:[%s181 + $0x188] sm:$0xff]
        %v242 = vld [vmem:[%s181 + $0x190] sm:$0xff]
        %v243 = vld [vmem:[%s181 + $0x198] sm:$0xff]
        %v244 = vld [vmem:[%s181 + $0x1a0] sm:$0xff]
        %v245 = vld [vmem:[%s181 + $0x1a8] sm:$0xff]
        %v246 = vld [vmem:[%s181 + $0x1b0] sm:$0xff]
        %v247 = vld [vmem:[%s181 + $0x1b8] sm:$0xff]
        %v248 = vld [vmem:[%s181 + $0x1c0] sm:$0xff]
        %v249 = vld [vmem:[%s181 + $0x1c8] sm:$0xff]
        %v250 = vld [vmem:[%s181 + $0x1d0] sm:$0xff]
        %v251 = vld [vmem:[%s181 + $0x1d8] sm:$0xff]
        %v252 = vld [vmem:[%s181 + $0x1e0] sm:$0xff]
        %v253 = vld [vmem:[%s181 + $0x1e8] sm:$0xff]
        %v254 = vld [vmem:[%s181 + $0x1f0] sm:$0xff]
        %v255 = vld [vmem:[%s181 + $0x1f8] sm:$0xff]
        %vm256 = vcmp.ge.f32.partialorder %v192, 0.0
        %vm257 = vcmp.ge.f32.partialorder %v193, 0.0
        %vm258 = vcmp.ge.f32.partialorder %v194, 0.0
        %vm259 = vcmp.ge.f32.partialorder %v195, 0.0
        %vm260 = vcmp.ge.f32.partialorder %v196, 0.0
        %vm261 = vcmp.ge.f32.partialorder %v197, 0.0
        %vm262 = vcmp.ge.f32.partialorder %v198, 0.0
        %vm263 = vcmp.ge.f32.partialorder %v199, 0.0
        %vm264 = vcmp.ge.f32.partialorder %v200, 0.0
        %vm265 = vcmp.ge.f32.partialorder %v201, 0.0
        %vm266 = vcmp.ge.f32.partialorder %v202, 0.0
        %vm267 = vcmp.ge.f32.partialorder %v203, 0.0
        %vm268 = vcmp.ge.f32.partialorder %v204, 0.0
        %vm269 = vcmp.ge.f32.partialorder %v205, 0.0
        %vm270 = vcmp.ge.f32.partialorder %v206, 0.0
        %vm271 = vcmp.ge.f32.partialorder %v207, 0.0
        %vm272 = vcmp.ge.f32.partialorder %v208, 0.0
        %vm273 = vcmp.ge.f32.partialorder %v209, 0.0
        %vm274 = vcmp.ge.f32.partialorder %v210, 0.0
        %vm275 = vcmp.ge.f32.partialorder %v211, 0.0
        %vm276 = vcmp.ge.f32.partialorder %v212, 0.0
        %vm277 = vcmp.ge.f32.partialorder %v213, 0.0
        %vm278 = vcmp.ge.f32.partialorder %v214, 0.0
        %vm279 = vcmp.ge.f32.partialorder %v215, 0.0
        %vm280 = vcmp.ge.f32.partialorder %v216, 0.0
        %vm281 = vcmp.ge.f32.partialorder %v217, 0.0
        %vm282 = vcmp.ge.f32.partialorder %v218, 0.0
        %vm283 = vcmp.ge.f32.partialorder %v219, 0.0
        %vm284 = vcmp.ge.f32.partialorder %v220, 0.0
        %vm285 = vcmp.ge.f32.partialorder %v221, 0.0
        %vm286 = vcmp.ge.f32.partialorder %v222, 0.0
        %vm287 = vcmp.ge.f32.partialorder %v223, 0.0
        %vm288 = vcmp.ge.f32.partialorder %v224, 0.0
        %vm289 = vcmp.ge.f32.partialorder %v225, 0.0
        %vm290 = vcmp.ge.f32.partialorder %v226, 0.0
        %vm291 = vcmp.ge.f32.partialorder %v227, 0.0
        %vm292 = vcmp.ge.f32.partialorder %v228, 0.0
        %vm293 = vcmp.ge.f32.partialorder %v229, 0.0
        %vm294 = vcmp.ge.f32.partialorder %v230, 0.0
        %vm295 = vcmp.ge.f32.partialorder %v231, 0.0
        %vm296 = vcmp.ge.f32.partialorder %v232, 0.0
        %vm297 = vcmp.ge.f32.partialorder %v233, 0.0
        %vm298 = vcmp.ge.f32.partialorder %v234, 0.0
        %vm299 = vcmp.ge.f32.partialorder %v235, 0.0
        %vm300 = vcmp.ge.f32.partialorder %v236, 0.0
        %vm301 = vcmp.ge.f32.partialorder %v237, 0.0
        %vm302 = vcmp.ge.f32.partialorder %v238, 0.0
        %vm303 = vcmp.ge.f32.partialorder %v239, 0.0
        %vm304 = vcmp.ge.f32.partialorder %v240, 0.0
        %vm305 = vcmp.ge.f32.partialorder %v241, 0.0
        %vm306 = vcmp.ge.f32.partialorder %v242, 0.0
        %vm307 = vcmp.ge.f32.partialorder %v243, 0.0
        %vm308 = vcmp.ge.f32.partialorder %v244, 0.0
        %vm309 = vcmp.ge.f32.partialorder %v245, 0.0
        %vm310 = vcmp.ge.f32.partialorder %v246, 0.0
        %vm311 = vcmp.ge.f32.partialorder %v247, 0.0
        %vm312 = vcmp.ge.f32.partialorder %v248, 0.0
        %vm313 = vcmp.ge.f32.partialorder %v249, 0.0
        %vm314 = vcmp.ge.f32.partialorder %v250, 0.0
        %vm315 = vcmp.ge.f32.partialorder %v251, 0.0
        %vm316 = vcmp.ge.f32.partialorder %v252, 0.0
        %vm317 = vcmp.ge.f32.partialorder %v253, 0.0
        %vm318 = vcmp.ge.f32.partialorder %v254, 0.0
        %vm319 = vcmp.ge.f32.partialorder %v255, 0.0
        %v320 = vmul.f32 %v192, 2.0
        %v321 = vmul.f32 %v193, 2.0
        %v322 = vmul.f32 %v194, 2.0
        %v323 = vmul.f32 %v195, 2.0
        %v324 = vmul.f32 %v196, 2.0
        %v325 = vmul.f32 %v197, 2.0
        %v326 = vmul.f32 %v198, 2.0
        %v327 = vmul.f32 %v199, 2.0
        %v328 = vmul.f32 %v200, 2.0
        %v329 = vmul.f32 %v201, 2.0
        %v330 = vmul.f32 %v202, 2.0
        %v331 = vmul.f32 %v203, 2.0
        %v332 = vmul.f32 %v204, 2.0
        %v333 = vmul.f32 %v205, 2.0
        %v334 = vmul.f32 %v206, 2.0
        %v335 = vmul.f32 %v207, 2.0
        %v336 = vmul.f32 %v208, 2.0
        %v337 = vmul.f32 %v209, 2.0
        %v338 = vmul.f32 %v210, 2.0
        %v339 = vmul.f32 %v211, 2.0
        %v340 = vmul.f32 %v212, 2.0
        %v341 = vmul.f32 %v213, 2.0
        %v342 = vmul.f32 %v214, 2.0
        %v343 = vmul.f32 %v215, 2.0
        %v344 = vmul.f32 %v216, 2.0
        %v345 = vmul.f32 %v217, 2.0
        %v346 = vmul.f32 %v218, 2.0
        %v347 = vmul.f32 %v219, 2.0
        %v348 = vmul.f32 %v220, 2.0
        %v349 = vmul.f32 %v221, 2.0
        %v350 = vmul.f32 %v222, 2.0
        %v351 = vmul.f32 %v223, 2.0
        %v352 = vmul.f32 %v224, 2.0
        %v353 = vmul.f32 %v225, 2.0
        %v354 = vmul.f32 %v226, 2.0
        %v355 = vmul.f32 %v227, 2.0
        %v356 = vmul.f32 %v228, 2.0
        %v357 = vmul.f32 %v229, 2.0
        %v358 = vmul.f32 %v230, 2.0
        %v359 = vmul.f32 %v231, 2.0
        %v360 = vmul.f32 %v232, 2.0
        %v361 = vmul.f32 %v233, 2.0
        %v362 = vmul.f32 %v234, 2.0
        %v363 = vmul.f32 %v235, 2.0
        %v364 = vmul.f32 %v236, 2.0
        %v365 = vmul.f32 %v237, 2.0
        %v366 = vmul.f32 %v238, 2.0
        %v367 = vmul.f32 %v239, 2.0
        %v368 = vmul.f32 %v240, 2.0
        %v369 = vmul.f32 %v241, 2.0
        %v370 = vmul.f32 %v242, 2.0
        %v371 = vmul.f32 %v243, 2.0
        %v372 = vmul.f32 %v244, 2.0
        %v373 = vmul.f32 %v245, 2.0
        %v374 = vmul.f32 %v246, 2.0
        %v375 = vmul.f32 %v247, 2.0
        %v376 = vmul.f32 %v248, 2.0
        %v377 = vmul.f32 %v249, 2.0
        %v378 = vmul.f32 %v250, 2.0
        %v379 = vmul.f32 %v251, 2.0
        %v380 = vmul.f32 %v252, 2.0
        %v381 = vmul.f32 %v253, 2.0
        %v382 = vmul.f32 %v254, 2.0
        %v383 = vmul.f32 %v255, 2.0
        %v384 = vsel %vm256, %v192, %v320
        %v385 = vsel %vm257, %v193, %v321
        %v386 = vsel %vm258, %v194, %v322
        %v387 = vsel %vm259, %v195, %v323
        %v388 = vsel %vm260, %v196, %v324
        %v389 = vsel %vm261, %v197, %v325
        %v390 = vsel %vm262, %v198, %v326
        %v391 = vsel %vm263, %v199, %v327
        %v392 = vsel %vm264, %v200, %v328
        %v393 = vsel %vm265, %v201, %v329
        %v394 = vsel %vm266, %v202, %v330
        %v395 = vsel %vm267, %v203, %v331
        %v396 = vsel %vm268, %v204, %v332
        %v397 = vsel %vm269, %v205, %v333
        %v398 = vsel %vm270, %v206, %v334
        %v399 = vsel %vm271, %v207, %v335
        %v400 = vsel %vm272, %v208, %v336
        %v401 = vsel %vm273, %v209, %v337
        %v402 = vsel %vm274, %v210, %v338
        %v403 = vsel %vm275, %v211, %v339
        %v404 = vsel %vm276, %v212, %v340
        %v405 = vsel %vm277, %v213, %v341
        %v406 = vsel %vm278, %v214, %v342
        %v407 = vsel %vm279, %v215, %v343
        %v408 = vsel %vm280, %v216, %v344
        %v409 = vsel %vm281, %v217, %v345
        %v410 = vsel %vm282, %v218, %v346
        %v411 = vsel %vm283, %v219, %v347
        %v412 = vsel %vm284, %v220, %v348
        %v413 = vsel %vm285, %v221, %v349
        %v414 = vsel %vm286, %v222, %v350
        %v415 = vsel %vm287, %v223, %v351
        %v416 = vsel %vm288, %v224, %v352
        %v417 = vsel %vm289, %v225, %v353
        %v418 = vsel %vm290, %v226, %v354
        %v419 = vsel %vm291, %v227, %v355
        %v420 = vsel %vm292, %v228, %v356
        %v421 = vsel %vm293, %v229, %v357
        %v422 = vsel %vm294, %v230, %v358
        %v423 = vsel %vm295, %v231, %v359
        %v424 = vsel %vm296, %v232, %v360
        %v425 = vsel %vm297, %v233, %v361
        %v426 = vsel %vm298, %v234, %v362
        %v427 = vsel %vm299, %v235, %v363
        %v428 = vsel %vm300, %v236, %v364
        %v429 = vsel %vm301, %v237, %v365
        %v430 = vsel %vm302, %v238, %v366
        %v431 = vsel %vm303, %v239, %v367
        %v432 = vsel %vm304, %v240, %v368
        %v433 = vsel %vm305, %v241, %v369
        %v434 = vsel %vm306, %v242, %v370
        %v435 = vsel %vm307, %v243, %v371
        %v436 = vsel %vm308, %v244, %v372
        %v437 = vsel %vm309, %v245, %v373
        %v438 = vsel %vm310, %v246, %v374
        %v439 = vsel %vm311, %v247, %v375
        %v440 = vsel %vm312, %v248, %v376
        %v441 = vsel %vm313, %v249, %v377
        %v442 = vsel %vm314, %v250, %v378
        %v443 = vsel %vm315, %v251, %v379
        %v444 = vsel %vm316, %v252, %v380
        %v445 = vsel %vm317, %v253, %v381
        %v446 = vsel %vm318, %v254, %v382
        %v447 = vsel %vm319, %v255, %v383
        %v448 = vld [vmem:[%s1] sm:$0xff]
        %v449 = vld [vmem:[%s1 + $0x8] sm:$0xff]
        %v450 = vld [vmem:[%s2] sm:$0x1]
        %v452 = vlaneseq
        %v453 = vshrl.u32 %v452, 7
        %v454 = vsub.s32 0, %v453
        %v455 = vrot.slane %v450, %v454
        %vm457 = vcmask 130048
        %v459 = vsel %vm457, %v384, 0
        %v462 = vsel %vm457, %v385, 0
        %v465 = vsel %vm457, %v386, 0
        %v468 = vsel %vm457, %v387, 0
        %v471 = vsel %vm457, %v388, 0
        %v474 = vsel %vm457, %v389, 0
        %v477 = vsel %vm457, %v390, 0
        %v480 = vsel %vm457, %v391, 0
        %v483 = vsel %vm457, %v392, 0
        %v486 = vsel %vm457, %v393, 0
        %v489 = vsel %vm457, %v394, 0
        %v492 = vsel %vm457, %v395, 0
        %v495 = vsel %vm457, %v396, 0
        %v498 = vsel %vm457, %v397, 0
        %v501 = vsel %vm457, %v398, 0
        %v504 = vsel %vm457, %v399, 0
        %v507 = vsel %vm457, %v400, 0
        %v510 = vsel %vm457, %v401, 0
        %v513 = vsel %vm457, %v402, 0
        %v516 = vsel %vm457, %v403, 0
        %v519 = vsel %vm457, %v404, 0
        %v522 = vsel %vm457, %v405, 0
        %v525 = vsel %vm457, %v406, 0
        %v528 = vsel %vm457, %v407, 0
        %v531 = vsel %vm457, %v408, 0
        %v534 = vsel %vm457, %v409, 0
        %v537 = vsel %vm457, %v410, 0
        %v540 = vsel %vm457, %v411, 0
        %v543 = vsel %vm457, %v412, 0
        %v546 = vsel %vm457, %v413, 0
        %v549 = vsel %vm457, %v414, 0
        %v552 = vsel %vm457, %v415, 0
        %v555 = vsel %vm457, %v416, 0
        %v558 = vsel %vm457, %v417, 0
        %v561 = vsel %vm457, %v418, 0
        %v564 = vsel %vm457, %v419, 0
        %v567 = vsel %vm457, %v420, 0
        %v570 = vsel %vm457, %v421, 0
        %v573 = vsel %vm457, %v422, 0
        %v576 = vsel %vm457, %v423, 0
        %v579 = vsel %vm457, %v424, 0
        %v582 = vsel %vm457, %v425, 0
        %v585 = vsel %vm457, %v426, 0
        %v588 = vsel %vm457, %v427, 0
        %v591 = vsel %vm457, %v428, 0
        %v594 = vsel %vm457, %v429, 0
        %v597 = vsel %vm457, %v430, 0
        %v600 = vsel %vm457, %v431, 0
        %v603 = vsel %vm457, %v432, 0
        %v606 = vsel %vm457, %v433, 0
        %v609 = vsel %vm457, %v434, 0
        %v612 = vsel %vm457, %v435, 0
        %v615 = vsel %vm457, %v436, 0
        %v618 = vsel %vm457, %v437, 0
        %v621 = vsel %vm457, %v438, 0
        %v624 = vsel %vm457, %v439, 0
        %v627 = vsel %vm457, %v440, 0
        %v630 = vsel %vm457, %v441, 0
        %v633 = vsel %vm457, %v442, 0
        %v636 = vsel %vm457, %v443, 0
        %v639 = vsel %vm457, %v444, 0
        %v642 = vsel %vm457, %v445, 0
        %v645 = vsel %vm457, %v446, 0
        %v648 = vsel %vm457, %v447, 0
        %650 = vmatprep.subr.mxu0 0.0
        %651 = vmatpush1.msra.mxu0 %v448
        %652 = vmatprep.subr.mxu0 0.0
        %653 = vmatpush1.msra.mxu0 %v449
        %654 = vmatprep.subr.mxu0 0.0
        %655 = vmatpush1.msra.mxu0 0.0
        %656 = vmatprep.subr.mxu0 0.0
        %657 = vmatpush1.msra.mxu0 0.0
        %658 = vmatprep.subr.mxu0 0.0
        %659 = vmatpush1.msra.mxu0 0.0
        %660 = vmatprep.subr.mxu0 0.0
        %661 = vmatpush1.msra.mxu0 0.0
        %662 = vmatprep.subr.mxu0 0.0
        %663 = vmatpush1.msra.mxu0 0.0
        %664 = vmatprep.subr.mxu0 0.0
        %665 = vmatpush1.msra.mxu0 0.0
        %666 = vmatprep.subr.mxu0 0.0
        %667 = vmatpush1.msra.mxu0 0.0
        %668 = vmatprep.subr.mxu0 0.0
        %669 = vmatpush1.msra.mxu0 0.0
        %670 = vmatprep.subr.mxu0 0.0
        %671 = vmatpush1.msra.mxu0 0.0
        %672 = vmatprep.subr.mxu0 0.0
        %673 = vmatpush1.msra.mxu0 0.0
        %674 = vmatprep.subr.mxu0 0.0
        %675 = vmatpush1.msra.mxu0 0.0
        %676 = vmatprep.subr.mxu0 0.0
        %677 = vmatpush1.msra.mxu0 0.0
        %678 = vmatprep.subr.mxu0 0.0
        %679 = vmatpush1.msra.mxu0 0.0
        %680 = vmatprep.subr.mxu0 0.0
        %681 = vmatpush1.msra.mxu0 0.0
        %682 = vmatprep.subr.mxu0 0.0
        %683 = vmatpush1.msra.mxu0 0.0
        %684 = vmatprep.subr.mxu0 0.0
        %685 = vmatpush1.msra.mxu0 0.0
        %686 = vmatprep.subr.mxu0 0.0
        %687 = vmatpush1.msra.mxu0 0.0
        %688 = vmatprep.subr.mxu0 0.0
        %689 = vmatpush1.msra.mxu0 0.0
        %690 = vmatprep.subr.mxu0 0.0
        %691 = vmatpush1.msra.mxu0 0.0
        %692 = vmatprep.subr.mxu0 0.0
        %693 = vmatpush1.msra.mxu0 0.0
        %694 = vmatprep.subr.mxu0 0.0
        %695 = vmatpush1.msra.mxu0 0.0
        %696 = vmatprep.subr.mxu0 0.0
        %697 = vmatpush1.msra.mxu0 0.0
        %698 = vmatprep.subr.mxu0 0.0
        %699 = vmatpush1.msra.mxu0 0.0
        %700 = vmatprep.subr.mxu0 0.0
        %701 = vmatpush1.msra.mxu0 0.0
        %702 = vmatprep.subr.mxu0 0.0
        %703 = vmatpush1.msra.mxu0 0.0
        %704 = vmatprep.subr.mxu0 0.0
        %705 = vmatpush1.msra.mxu0 0.0
        %706 = vmatprep.subr.mxu0 0.0
        %707 = vmatpush1.msra.mxu0 0.0
        %708 = vmatprep.subr.mxu0 0.0
        %709 = vmatpush1.msra.mxu0 0.0
        %710 = vmatprep.subr.mxu0 0.0
        %711 = vmatpush1.msra.mxu0 0.0
        %712 = vmatprep.subr.mxu0 0.0
        %713 = vmatpush1.msra.mxu0 0.0
        %714 = vmatprep.mubr.f32.mxu0 0.0
        %715 = vmatmul.mubr.f32.gmra.mrb[0].mxu0 %v459
        %v716 = vpop.f32.mrb[0].mxu0
        %v717 = vadd.f32 %v455, %v716
        %v718 = vpop.f32.mrb[0].mxu0
        %719 = vmatprep.mubr.f32.mxu0 0.0
        %720 = vmatmul.mubr.f32.gmra.mrb[0].mxu0 %v462
        %v721 = vpop.f32.mrb[0].mxu0
        %v722 = vadd.f32 %v455, %v721
        %v723 = vpop.f32.mrb[0].mxu0
        %724 = vmatprep.mubr.f32.mxu0 0.0
        %725 = vmatmul.mubr.f32.gmra.mrb[0].mxu0 %v465
        %v726 = vpop.f32.mrb[0].mxu0
        %v727 = vadd.f32 %v455, %v726
        %v728 = vpop.f32.mrb[0].mxu0
        %729 = vmatprep.mubr.f32.mxu0 0.0
        %730 = vmatmul.mubr.f32.gmra.mrb[0].mxu0 %v468
        %v731 = vpop.f32.mrb[0].mxu0
        %v732 = vadd.f32 %v455, %v731
        %v733 = vpop.f32.mrb[0].mxu0
        %734 = vmatprep.mubr.f32.mxu0 0.0
        %735 = vmatmul.mubr.f32.gmra.mrb[0].mxu0 %v471
        %v736 = vpop.f32.mrb[0].mxu0
        %v737 = vadd.f32 %v455, %v736
        %v738 = vpop.f32.mrb[0].mxu0
        %739 = vmatprep.mubr.f32.mxu0 0.0
        %740 = vmatmul.mubr.f32.gmra.mrb[0].mxu0 %v474
        %v741 = vpop.f32.mrb[0].mxu0
        %v742 = vadd.f32 %v455, %v741
        %v743 = vpop.f32.mrb[0].mxu0
        %744 = vmatprep.mubr.f32.mxu0 0.0
        %745 = vmatmul.mubr.f32.gmra.mrb[0].mxu0 %v477
        %v746 = vpop.f32.mrb[0].mxu0
        %v747 = vadd.f32 %v455, %v746
        %v748 = vpop.f32.mrb[0].mxu0
        %749 = vmatprep.mubr.f32.mxu0 0.0
        %750 = vmatmul.mubr.f32.gmra.mrb[0].mxu0 %v480
        %v751 = vpop.f32.mrb[0].mxu0
        %v752 = vadd.f32 %v455, %v751
        %v753 = vpop.f32.mrb[0].mxu0
        %754 = vmatprep.mubr.f32.mxu0 0.0
        %755 = vmatmul.mubr.f32.gmra.mrb[0].mxu0 %v483
        %v756 = vpop.f32.mrb[0].mxu0
        %v757 = vadd.f32 %v455, %v756
        %v758 = vpop.f32.mrb[0].mxu0
        %759 = vmatprep.mubr.f32.mxu0 0.0
        %760 = vmatmul.mubr.f32.gmra.mrb[0].mxu0 %v486
        %v761 = vpop.f32.mrb[0].mxu0
        %v762 = vadd.f32 %v455, %v761
        %v763 = vpop.f32.mrb[0].mxu0
        %764 = vmatprep.mubr.f32.mxu0 0.0
        %765 = vmatmul.mubr.f32.gmra.mrb[0].mxu0 %v489
        %v766 = vpop.f32.mrb[0].mxu0
        %v767 = vadd.f32 %v455, %v766
        %v768 = vpop.f32.mrb[0].mxu0
        %769 = vmatprep.mubr.f32.mxu0 0.0
        %770 = vmatmul.mubr.f32.gmra.mrb[0].mxu0 %v492
        %v771 = vpop.f32.mrb[0].mxu0
        %v772 = vadd.f32 %v455, %v771
        %v773 = vpop.f32.mrb[0].mxu0
        %774 = vmatprep.mubr.f32.mxu0 0.0
        %775 = vmatmul.mubr.f32.gmra.mrb[0].mxu0 %v495
        %v776 = vpop.f32.mrb[0].mxu0
        %v777 = vadd.f32 %v455, %v776
        %v778 = vpop.f32.mrb[0].mxu0
        %779 = vmatprep.mubr.f32.mxu0 0.0
        %780 = vmatmul.mubr.f32.gmra.mrb[0].mxu0 %v498
        %v781 = vpop.f32.mrb[0].mxu0
        %v782 = vadd.f32 %v455, %v781
        %v783 = vpop.f32.mrb[0].mxu0
        %784 = vmatprep.mubr.f32.mxu0 0.0
        %785 = vmatmul.mubr.f32.gmra.mrb[0].mxu0 %v501
        %v786 = vpop.f32.mrb[0].mxu0
        %v787 = vadd.f32 %v455, %v786
        %v788 = vpop.f32.mrb[0].mxu0
        %789 = vmatprep.mubr.f32.mxu0 0.0
        %790 = vmatmul.mubr.f32.gmra.mrb[0].mxu0 %v504
        %v791 = vpop.f32.mrb[0].mxu0
        %v792 = vadd.f32 %v455, %v791
        %v793 = vpop.f32.mrb[0].mxu0
        %794 = vmatprep.mubr.f32.mxu0 0.0
        %795 = vmatmul.mubr.f32.gmra.mrb[0].mxu0 %v507
        %v796 = vpop.f32.mrb[0].mxu0
        %v797 = vadd.f32 %v455, %v796
        %v798 = vpop.f32.mrb[0].mxu0
        %799 = vmatprep.mubr.f32.mxu0 0.0
        %800 = vmatmul.mubr.f32.gmra.mrb[0].mxu0 %v510
        %v801 = vpop.f32.mrb[0].mxu0
        %v802 = vadd.f32 %v455, %v801
        %v803 = vpop.f32.mrb[0].mxu0
        %804 = vmatprep.mubr.f32.mxu0 0.0
        %805 = vmatmul.mubr.f32.gmra.mrb[0].mxu0 %v513
        %v806 = vpop.f32.mrb[0].mxu0
        %v807 = vadd.f32 %v455, %v806
        %v808 = vpop.f32.mrb[0].mxu0
        %809 = vmatprep.mubr.f32.mxu0 0.0
        %810 = vmatmul.mubr.f32.gmra.mrb[0].mxu0 %v516
        %v811 = vpop.f32.mrb[0].mxu0
        %v812 = vadd.f32 %v455, %v811
        %v813 = vpop.f32.mrb[0].mxu0
        %814 = vmatprep.mubr.f32.mxu0 0.0
        %815 = vmatmul.mubr.f32.gmra.mrb[0].mxu0 %v519
        %v816 = vpop.f32.mrb[0].mxu0
        %v817 = vadd.f32 %v455, %v816
        %v818 = vpop.f32.mrb[0].mxu0
        %819 = vmatprep.mubr.f32.mxu0 0.0
        %820 = vmatmul.mubr.f32.gmra.mrb[0].mxu0 %v522
        %v821 = vpop.f32.mrb[0].mxu0
        %v822 = vadd.f32 %v455, %v821
        %v823 = vpop.f32.mrb[0].mxu0
        %824 = vmatprep.mubr.f32.mxu0 0.0
        %825 = vmatmul.mubr.f32.gmra.mrb[0].mxu0 %v525
        %v826 = vpop.f32.mrb[0].mxu0
        %v827 = vadd.f32 %v455, %v826
        %v828 = vpop.f32.mrb[0].mxu0
        %829 = vmatprep.mubr.f32.mxu0 0.0
        %830 = vmatmul.mubr.f32.gmra.mrb[0].mxu0 %v528
        %v831 = vpop.f32.mrb[0].mxu0
        %v832 = vadd.f32 %v455, %v831
        %v833 = vpop.f32.mrb[0].mxu0
        %834 = vmatprep.mubr.f32.mxu0 0.0
        %835 = vmatmul.mubr.f32.gmra.mrb[0].mxu0 %v531
        %v836 = vpop.f32.mrb[0].mxu0
        %v837 = vadd.f32 %v455, %v836
        %v838 = vpop.f32.mrb[0].mxu0
        %839 = vmatprep.mubr.f32.mxu0 0.0
        %840 = vmatmul.mubr.f32.gmra.mrb[0].mxu0 %v534
        %v841 = vpop.f32.mrb[0].mxu0
        %v842 = vadd.f32 %v455, %v841
        %v843 = vpop.f32.mrb[0].mxu0
        %844 = vmatprep.mubr.f32.mxu0 0.0
        %845 = vmatmul.mubr.f32.gmra.mrb[0].mxu0 %v537
        %v846 = vpop.f32.mrb[0].mxu0
        %v847 = vadd.f32 %v455, %v846
        %v848 = vpop.f32.mrb[0].mxu0
        %849 = vmatprep.mubr.f32.mxu0 0.0
        %850 = vmatmul.mubr.f32.gmra.mrb[0].mxu0 %v540
        %v851 = vpop.f32.mrb[0].mxu0
        %v852 = vadd.f32 %v455, %v851
        %v853 = vpop.f32.mrb[0].mxu0
        %854 = vmatprep.mubr.f32.mxu0 0.0
        %855 = vmatmul.mubr.f32.gmra.mrb[0].mxu0 %v543
        %v856 = vpop.f32.mrb[0].mxu0
        %v857 = vadd.f32 %v455, %v856
        %v858 = vpop.f32.mrb[0].mxu0
        %859 = vmatprep.mubr.f32.mxu0 0.0
        %860 = vmatmul.mubr.f32.gmra.mrb[0].mxu0 %v546
        %v861 = vpop.f32.mrb[0].mxu0
        %v862 = vadd.f32 %v455, %v861
        %v863 = vpop.f32.mrb[0].mxu0
        %864 = vmatprep.mubr.f32.mxu0 0.0
        %865 = vmatmul.mubr.f32.gmra.mrb[0].mxu0 %v549
        %v866 = vpop.f32.mrb[0].mxu0
        %v867 = vadd.f32 %v455, %v866
        %v868 = vpop.f32.mrb[0].mxu0
        %869 = vmatprep.mubr.f32.mxu0 0.0
        %870 = vmatmul.mubr.f32.gmra.mrb[0].mxu0 %v552
        %v871 = vpop.f32.mrb[0].mxu0
        %v872 = vadd.f32 %v455, %v871
        %v873 = vpop.f32.mrb[0].mxu0
        %874 = vmatprep.mubr.f32.mxu0 0.0
        %875 = vmatmul.mubr.f32.gmra.mrb[0].mxu0 %v555
        %v876 = vpop.f32.mrb[0].mxu0
        %v877 = vadd.f32 %v455, %v876
        %v878 = vpop.f32.mrb[0].mxu0
        %879 = vmatprep.mubr.f32.mxu0 0.0
        %880 = vmatmul.mubr.f32.gmra.mrb[0].mxu0 %v558
        %v881 = vpop.f32.mrb[0].mxu0
        %v882 = vadd.f32 %v455, %v881
        %v883 = vpop.f32.mrb[0].mxu0
        %884 = vmatprep.mubr.f32.mxu0 0.0
        %885 = vmatmul.mubr.f32.gmra.mrb[0].mxu0 %v561
        %v886 = vpop.f32.mrb[0].mxu0
        %v887 = vadd.f32 %v455, %v886
        %v888 = vpop.f32.mrb[0].mxu0
        %889 = vmatprep.mubr.f32.mxu0 0.0
        %890 = vmatmul.mubr.f32.gmra.mrb[0].mxu0 %v564
        %v891 = vpop.f32.mrb[0].mxu0
        %v892 = vadd.f32 %v455, %v891
        %v893 = vpop.f32.mrb[0].mxu0
        %894 = vmatprep.mubr.f32.mxu0 0.0
        %895 = vmatmul.mubr.f32.gmra.mrb[0].mxu0 %v567
        %v896 = vpop.f32.mrb[0].mxu0
        %v897 = vadd.f32 %v455, %v896
        %v898 = vpop.f32.mrb[0].mxu0
        %899 = vmatprep.mubr.f32.mxu0 0.0
        %900 = vmatmul.mubr.f32.gmra.mrb[0].mxu0 %v570
        %v901 = vpop.f32.mrb[0].mxu0
        %v902 = vadd.f32 %v455, %v901
        %v903 = vpop.f32.mrb[0].mxu0
        %904 = vmatprep.mubr.f32.mxu0 0.0
        %905 = vmatmul.mubr.f32.gmra.mrb[0].mxu0 %v573
        %v906 = vpop.f32.mrb[0].mxu0
        %v907 = vadd.f32 %v455, %v906
        %v908 = vpop.f32.mrb[0].mxu0
        %909 = vmatprep.mubr.f32.mxu0 0.0
        %910 = vmatmul.mubr.f32.gmra.mrb[0].mxu0 %v576
        %v911 = vpop.f32.mrb[0].mxu0
        %v912 = vadd.f32 %v455, %v911
        %v913 = vpop.f32.mrb[0].mxu0
        %914 = vmatprep.mubr.f32.mxu0 0.0
        %915 = vmatmul.mubr.f32.gmra.mrb[0].mxu0 %v579
        %v916 = vpop.f32.mrb[0].mxu0
        %v917 = vadd.f32 %v455, %v916
        %v918 = vpop.f32.mrb[0].mxu0
        %919 = vmatprep.mubr.f32.mxu0 0.0
        %920 = vmatmul.mubr.f32.gmra.mrb[0].mxu0 %v582
        %v921 = vpop.f32.mrb[0].mxu0
        %v922 = vadd.f32 %v455, %v921
        %v923 = vpop.f32.mrb[0].mxu0
        %924 = vmatprep.mubr.f32.mxu0 0.0
        %925 = vmatmul.mubr.f32.gmra.mrb[0].mxu0 %v585
        %v926 = vpop.f32.mrb[0].mxu0
        %v927 = vadd.f32 %v455, %v926
        %v928 = vpop.f32.mrb[0].mxu0
        %929 = vmatprep.mubr.f32.mxu0 0.0
        %930 = vmatmul.mubr.f32.gmra.mrb[0].mxu0 %v588
        %v931 = vpop.f32.mrb[0].mxu0
        %v932 = vadd.f32 %v455, %v931
        %v933 = vpop.f32.mrb[0].mxu0
        %934 = vmatprep.mubr.f32.mxu0 0.0
        %935 = vmatmul.mubr.f32.gmra.mrb[0].mxu0 %v591
        %v936 = vpop.f32.mrb[0].mxu0
        %v937 = vadd.f32 %v455, %v936
        %v938 = vpop.f32.mrb[0].mxu0
        %939 = vmatprep.mubr.f32.mxu0 0.0
        %940 = vmatmul.mubr.f32.gmra.mrb[0].mxu0 %v594
        %v941 = vpop.f32.mrb[0].mxu0
        %v942 = vadd.f32 %v455, %v941
        %v943 = vpop.f32.mrb[0].mxu0
        %944 = vmatprep.mubr.f32.mxu0 0.0
        %945 = vmatmul.mubr.f32.gmra.mrb[0].mxu0 %v597
        %v946 = vpop.f32.mrb[0].mxu0
        %v947 = vadd.f32 %v455, %v946
        %v948 = vpop.f32.mrb[0].mxu0
        %949 = vmatprep.mubr.f32.mxu0 0.0
        %950 = vmatmul.mubr.f32.gmra.mrb[0].mxu0 %v600
        %v951 = vpop.f32.mrb[0].mxu0
        %v952 = vadd.f32 %v455, %v951
        %v953 = vpop.f32.mrb[0].mxu0
        %954 = vmatprep.mubr.f32.mxu0 0.0
        %955 = vmatmul.mubr.f32.gmra.mrb[0].mxu0 %v603
        %v956 = vpop.f32.mrb[0].mxu0
        %v957 = vadd.f32 %v455, %v956
        %v958 = vpop.f32.mrb[0].mxu0
        %959 = vmatprep.mubr.f32.mxu0 0.0
        %960 = vmatmul.mubr.f32.gmra.mrb[0].mxu0 %v606
        %v961 = vpop.f32.mrb[0].mxu0
        %v962 = vadd.f32 %v455, %v961
        %v963 = vpop.f32.mrb[0].mxu0
        %964 = vmatprep.mubr.f32.mxu0 0.0
        %965 = vmatmul.mubr.f32.gmra.mrb[0].mxu0 %v609
        %v966 = vpop.f32.mrb[0].mxu0
        %v967 = vadd.f32 %v455, %v966
        %v968 = vpop.f32.mrb[0].mxu0
        %969 = vmatprep.mubr.f32.mxu0 0.0
        %970 = vmatmul.mubr.f32.gmra.mrb[0].mxu0 %v612
        %v971 = vpop.f32.mrb[0].mxu0
        %v972 = vadd.f32 %v455, %v971
        %v973 = vpop.f32.mrb[0].mxu0
        %974 = vmatprep.mubr.f32.mxu0 0.0
        %975 = vmatmul.mubr.f32.gmra.mrb[0].mxu0 %v615
        %v976 = vpop.f32.mrb[0].mxu0
        %v977 = vadd.f32 %v455, %v976
        %v978 = vpop.f32.mrb[0].mxu0
        %979 = vmatprep.mubr.f32.mxu0 0.0
        %980 = vmatmul.mubr.f32.gmra.mrb[0].mxu0 %v618
        %v981 = vpop.f32.mrb[0].mxu0
        %v982 = vadd.f32 %v455, %v981
        %v983 = vpop.f32.mrb[0].mxu0
        %984 = vmatprep.mubr.f32.mxu0 0.0
        %985 = vmatmul.mubr.f32.gmra.mrb[0].mxu0 %v621
        %v986 = vpop.f32.mrb[0].mxu0
        %v987 = vadd.f32 %v455, %v986
        %v988 = vpop.f32.mrb[0].mxu0
        %989 = vmatprep.mubr.f32.mxu0 0.0
        %990 = vmatmul.mubr.f32.gmra.mrb[0].mxu0 %v624
        %v991 = vpop.f32.mrb[0].mxu0
        %v992 = vadd.f32 %v455, %v991
        %v993 = vpop.f32.mrb[0].mxu0
        %994 = vmatprep.mubr.f32.mxu0 0.0
        %995 = vmatmul.mubr.f32.gmra.mrb[0].mxu0 %v627
        %v996 = vpop.f32.mrb[0].mxu0
        %v997 = vadd.f32 %v455, %v996
        %v998 = vpop.f32.mrb[0].mxu0
        %999 = vmatprep.mubr.f32.mxu0 0.0
        %1000 = vmatmul.mubr.f32.gmra.mrb[0].mxu0 %v630
        %v1001 = vpop.f32.mrb[0].mxu0
        %v1002 = vadd.f32 %v455, %v1001
        %v1003 = vpop.f32.mrb[0].mxu0
        %1004 = vmatprep.mubr.f32.mxu0 0.0
        %1005 = vmatmul.mubr.f32.gmra.mrb[0].mxu0 %v633
        %v1006 = vpop.f32.mrb[0].mxu0
        %v1007 = vadd.f32 %v455, %v1006
        %v1008 = vpop.f32.mrb[0].mxu0
        %1009 = vmatprep.mubr.f32.mxu0 0.0
        %1010 = vmatmul.mubr.f32.gmra.mrb[0].mxu0 %v636
        %v1011 = vpop.f32.mrb[0].mxu0
        %v1012 = vadd.f32 %v455, %v1011
        %v1013 = vpop.f32.mrb[0].mxu0
        %1014 = vmatprep.mubr.f32.mxu0 0.0
        %1015 = vmatmul.mubr.f32.gmra.mrb[0].mxu0 %v639
        %v1016 = vpop.f32.mrb[0].mxu0
        %v1017 = vadd.f32 %v455, %v1016
        %v1018 = vpop.f32.mrb[0].mxu0
        %1019 = vmatprep.mubr.f32.mxu0 0.0
        %1020 = vmatmul.mubr.f32.gmra.mrb[0].mxu0 %v642
        %v1021 = vpop.f32.mrb[0].mxu0
        %v1022 = vadd.f32 %v455, %v1021
        %v1023 = vpop.f32.mrb[0].mxu0
        %1024 = vmatprep.mubr.f32.mxu0 0.0
        %1025 = vmatmul.mubr.f32.gmra.mrb[0].mxu0 %v645
        %v1026 = vpop.f32.mrb[0].mxu0
        %v1027 = vadd.f32 %v455, %v1026
        %v1028 = vpop.f32.mrb[0].mxu0
        %1029 = vmatprep.mubr.f32.mxu0 0.0
        %1030 = vmatmul.mubr.f32.gmra.mrb[0].mxu0 %v648
        %v1031 = vpop.f32.mrb[0].mxu0
        %v1032 = vadd.f32 %v455, %v1031
        %v1033 = vpop.f32.mrb[0].mxu0
        %1034 = vdwg.mxu0
        %vm1035 = vcmask 64512
        %1036 = vst.msk [vmem:[%s172] sm:$0xff] %vm1035, %v717
        %1037 = vst.msk [vmem:[%s172 + $0x8] sm:$0xff] %vm1035, %v722
        %1038 = vst.msk [vmem:[%s172 + $0x10] sm:$0xff] %vm1035, %v727
        %1039 = vst.msk [vmem:[%s172 + $0x18] sm:$0xff] %vm1035, %v732
        %1040 = vst.msk [vmem:[%s172 + $0x20] sm:$0xff] %vm1035, %v737
        %1041 = vst.msk [vmem:[%s172 + $0x28] sm:$0xff] %vm1035, %v742
        %1042 = vst.msk [vmem:[%s172 + $0x30] sm:$0xff] %vm1035, %v747
        %1043 = vst.msk [vmem:[%s172 + $0x38] sm:$0xff] %vm1035, %v752
        %1044 = vst.msk [vmem:[%s172 + $0x40] sm:$0xff] %vm1035, %v757
        %1045 = vst.msk [vmem:[%s172 + $0x48] sm:$0xff] %vm1035, %v762
        %1046 = vst.msk [vmem:[%s172 + $0x50] sm:$0xff] %vm1035, %v767
        %1047 = vst.msk [vmem:[%s172 + $0x58] sm:$0xff] %vm1035, %v772
        %1048 = vst.msk [vmem:[%s172 + $0x60] sm:$0xff] %vm1035, %v777
        %1049 = vst.msk [vmem:[%s172 + $0x68] sm:$0xff] %vm1035, %v782
        %1050 = vst.msk [vmem:[%s172 + $0x70] sm:$0xff] %vm1035, %v787
        %1051 = vst.msk [vmem:[%s172 + $0x78] sm:$0xff] %vm1035, %v792
        %1052 = vst.msk [vmem:[%s172 + $0x80] sm:$0xff] %vm1035, %v797
        %1053 = vst.msk [vmem:[%s172 + $0x88] sm:$0xff] %vm1035, %v802
        %1054 = vst.msk [vmem:[%s172 + $0x90] sm:$0xff] %vm1035, %v807
        %1055 = vst.msk [vmem:[%s172 + $0x98] sm:$0xff] %vm1035, %v812
        %1056 = vst.msk [vmem:[%s172 + $0xa0] sm:$0xff] %vm1035, %v817
        %1057 = vst.msk [vmem:[%s172 + $0xa8] sm:$0xff] %vm1035, %v822
        %1058 = vst.msk [vmem:[%s172 + $0xb0] sm:$0xff] %vm1035, %v827
        %1059 = vst.msk [vmem:[%s172 + $0xb8] sm:$0xff] %vm1035, %v832
        %1060 = vst.msk [vmem:[%s172 + $0xc0] sm:$0xff] %vm1035, %v837
        %1061 = vst.msk [vmem:[%s172 + $0xc8] sm:$0xff] %vm1035, %v842
        %1062 = vst.msk [vmem:[%s172 + $0xd0] sm:$0xff] %vm1035, %v847
        %1063 = vst.msk [vmem:[%s172 + $0xd8] sm:$0xff] %vm1035, %v852
        %1064 = vst.msk [vmem:[%s172 + $0xe0] sm:$0xff] %vm1035, %v857
        %1065 = vst.msk [vmem:[%s172 + $0xe8] sm:$0xff] %vm1035, %v862
        %1066 = vst.msk [vmem:[%s172 + $0xf0] sm:$0xff] %vm1035, %v867
        %1067 = vst.msk [vmem:[%s172 + $0xf8] sm:$0xff] %vm1035, %v872
        %1068 = vst.msk [vmem:[%s172 + $0x100] sm:$0xff] %vm1035, %v877
        %1069 = vst.msk [vmem:[%s172 + $0x108] sm:$0xff] %vm1035, %v882
        %1070 = vst.msk [vmem:[%s172 + $0x110] sm:$0xff] %vm1035, %v887
        %1071 = vst.msk [vmem:[%s172 + $0x118] sm:$0xff] %vm1035, %v892
        %1072 = vst.msk [vmem:[%s172 + $0x120] sm:$0xff] %vm1035, %v897
        %1073 = vst.msk [vmem:[%s172 + $0x128] sm:$0xff] %vm1035, %v902
        %1074 = vst.msk [vmem:[%s172 + $0x130] sm:$0xff] %vm1035, %v907
        %1075 = vst.msk [vmem:[%s172 + $0x138] sm:$0xff] %vm1035, %v912
        %1076 = vst.msk [vmem:[%s172 + $0x140] sm:$0xff] %vm1035, %v917
        %1077 = vst.msk [vmem:[%s172 + $0x148] sm:$0xff] %vm1035, %v922
        %1078 = vst.msk [vmem:[%s172 + $0x150] sm:$0xff] %vm1035, %v927
        %1079 = vst.msk [vmem:[%s172 + $0x158] sm:$0xff] %vm1035, %v932
        %1080 = vst.msk [vmem:[%s172 + $0x160] sm:$0xff] %vm1035, %v937
        %1081 = vst.msk [vmem:[%s172 + $0x168] sm:$0xff] %vm1035, %v942
        %1082 = vst.msk [vmem:[%s172 + $0x170] sm:$0xff] %vm1035, %v947
        %1083 = vst.msk [vmem:[%s172 + $0x178] sm:$0xff] %vm1035, %v952
        %1084 = vst.msk [vmem:[%s172 + $0x180] sm:$0xff] %vm1035, %v957
        %1085 = vst.msk [vmem:[%s172 + $0x188] sm:$0xff] %vm1035, %v962
        %1086 = vst.msk [vmem:[%s172 + $0x190] sm:$0xff] %vm1035, %v967
        %1087 = vst.msk [vmem:[%s172 + $0x198] sm:$0xff] %vm1035, %v972
        %1088 = vst.msk [vmem:[%s172 + $0x1a0] sm:$0xff] %vm1035, %v977
        %1089 = vst.msk [vmem:[%s172 + $0x1a8] sm:$0xff] %vm1035, %v982
        %1090 = vst.msk [vmem:[%s172 + $0x1b0] sm:$0xff] %vm1035, %v987
        %1091 = vst.msk [vmem:[%s172 + $0x1b8] sm:$0xff] %vm1035, %v992
        %1092 = vst.msk [vmem:[%s172 + $0x1c0] sm:$0xff] %vm1035, %v997
        %1093 = vst.msk [vmem:[%s172 + $0x1c8] sm:$0xff] %vm1035, %v1002
        %1094 = vst.msk [vmem:[%s172 + $0x1d0] sm:$0xff] %vm1035, %v1007
        %1095 = vst.msk [vmem:[%s172 + $0x1d8] sm:$0xff] %vm1035, %v1012
        %1096 = vst.msk [vmem:[%s172 + $0x1e0] sm:$0xff] %vm1035, %v1017
        %1097 = vst.msk [vmem:[%s172 + $0x1e8] sm:$0xff] %vm1035, %v1022
        %1098 = vst.msk [vmem:[%s172 + $0x1f0] sm:$0xff] %vm1035, %v1027
        %1099 = vst.msk [vmem:[%s172 + $0x1f8] sm:$0xff] %vm1035, %v1032
        %s1100 = sand.u32 %s90, 1
        %s1101 = sand.u32 %s90, 1
        %s1102 = smul.addr %s1101, 512
        %s1103 = scalar_lea.vmem [#allocation2], %s1102
        // Predicated region
        $region33: #{tpu_custom_call.1} parent=31 // pred_check
          %p1104 = pneg %p100
        $region34: #{tpu_custom_call.1} parent=31 // pred_check_branch
          %1106 = sbr.rel (%p1104) target = $region36
        $region35: #{tpu_custom_call.1} parent=31 // pred_region
          %s1107 = smul.u32 64, %s14
          %s1108 = ssub.s32 125, %s1107
          %p1109 = scmp.lt.s32.totalorder %s1108, 64
          %s1110 = scalar_select %p1109, %s1108, 64
          %s1111 = smul.u32 128, %s1110
          %p1112 = scmp.ne.s32.totalorder 0, %s1111
          %s1113 = smul.addr %s1107, 8
          %s1114 = scalar_lea.vmem %s3, %s1113
          // Predicated region
          $region37: #{tpu_custom_call.1} parent=35 // pred_check
            %p1115 = pneg %p1112
          $region38: #{tpu_custom_call.1} parent=35 // pred_check_branch
            %1117 = sbr.rel (%p1115) target = $region40
          $region39: #{tpu_custom_call.1} parent=35 // pred_region
            // Predicated region
            $region41: #{tpu_custom_call.1} parent=39 // pred_check
              _
            $region42: #{tpu_custom_call.1} parent=39 // pred_check_branch
              %1119 = sbr.rel (0) target = $region44
            $region43: #{tpu_custom_call.1} parent=39 // pred_region
              // Predicated region
              $region63: #{tpu_custom_call.1} parent=43 // pred_check
                _
              $region64: #{tpu_custom_call.1} parent=43 // pred_check_branch
                %1294 = sbr.rel (0) target = $region66
              $region65: #{tpu_custom_call.1} parent=43 // pred_region
                %s1295 = sshrl.u32 %s1110, 6
                // While loop
                $region67: #{tpu_custom_call.1} parent=65 // loop_pre_header
                  _
                $region68: #{tpu_custom_call.1} parent=65 // loop_header
                  %s1297 = sphi 0, %s1299
                  %p1298 = scmp.ge.s32.totalorder %s1297, %s1295
                  %s1302 = sphi 0, %s1435
                  %s1303 = sphi %s1103, %s1438
                  %s1304 = sphi %s1114, %s1439
                $region69: #{tpu_custom_call.1} parent=65 // loop_header_branch
                  %1301 = sbr.rel (%p1298) target = $region73
                $region70: #{tpu_custom_call.1} parent=65 // loop_body
                  %v1305 = vld [vmem:[%s1303] sm:$0xff]
                  %1306 = vst [vmem:[%s1304] sm:$0xff] %v1305
                  %v1307 = vld [vmem:[%s1303 + $0x8] sm:$0xff]
                  %1308 = vst [vmem:[%s1304 + $0x8] sm:$0xff] %v1307
                  %v1309 = vld [vmem:[%s1303 + $0x10] sm:$0xff]
                  %1310 = vst [vmem:[%s1304 + $0x10] sm:$0xff] %v1309
                  %v1311 = vld [vmem:[%s1303 + $0x18] sm:$0xff]
                  %1312 = vst [vmem:[%s1304 + $0x18] sm:$0xff] %v1311
                  %v1313 = vld [vmem:[%s1303 + $0x20] sm:$0xff]
                  %1314 = vst [vmem:[%s1304 + $0x20] sm:$0xff] %v1313
                  %v1315 = vld [vmem:[%s1303 + $0x28] sm:$0xff]
                  %1316 = vst [vmem:[%s1304 + $0x28] sm:$0xff] %v1315
                  %v1317 = vld [vmem:[%s1303 + $0x30] sm:$0xff]
                  %1318 = vst [vmem:[%s1304 + $0x30] sm:$0xff] %v1317
                  %v1319 = vld [vmem:[%s1303 + $0x38] sm:$0xff]
                  %1320 = vst [vmem:[%s1304 + $0x38] sm:$0xff] %v1319
                  %v1321 = vld [vmem:[%s1303 + $0x40] sm:$0xff]
                  %1322 = vst [vmem:[%s1304 + $0x40] sm:$0xff] %v1321
                  %v1323 = vld [vmem:[%s1303 + $0x48] sm:$0xff]
                  %1324 = vst [vmem:[%s1304 + $0x48] sm:$0xff] %v1323
                  %v1325 = vld [vmem:[%s1303 + $0x50] sm:$0xff]
                  %1326 = vst [vmem:[%s1304 + $0x50] sm:$0xff] %v1325
                  %v1327 = vld [vmem:[%s1303 + $0x58] sm:$0xff]
                  %1328 = vst [vmem:[%s1304 + $0x58] sm:$0xff] %v1327
                  %v1329 = vld [vmem:[%s1303 + $0x60] sm:$0xff]
                  %1330 = vst [vmem:[%s1304 + $0x60] sm:$0xff] %v1329
                  %v1331 = vld [vmem:[%s1303 + $0x68] sm:$0xff]
                  %1332 = vst [vmem:[%s1304 + $0x68] sm:$0xff] %v1331
                  %v1333 = vld [vmem:[%s1303 + $0x70] sm:$0xff]
                  %1334 = vst [vmem:[%s1304 + $0x70] sm:$0xff] %v1333
                  %v1335 = vld [vmem:[%s1303 + $0x78] sm:$0xff]
                  %1336 = vst [vmem:[%s1304 + $0x78] sm:$0xff] %v1335
                  %v1337 = vld [vmem:[%s1303 + $0x80] sm:$0xff]
                  %1338 = vst [vmem:[%s1304 + $0x80] sm:$0xff] %v1337
                  %v1339 = vld [vmem:[%s1303 + $0x88] sm:$0xff]
                  %1340 = vst [vmem:[%s1304 + $0x88] sm:$0xff] %v1339
                  %v1341 = vld [vmem:[%s1303 + $0x90] sm:$0xff]
                  %1342 = vst [vmem:[%s1304 + $0x90] sm:$0xff] %v1341
                  %v1343 = vld [vmem:[%s1303 + $0x98] sm:$0xff]
                  %1344 = vst [vmem:[%s1304 + $0x98] sm:$0xff] %v1343
                  %v1345 = vld [vmem:[%s1303 + $0xa0] sm:$0xff]
                  %1346 = vst [vmem:[%s1304 + $0xa0] sm:$0xff] %v1345
                  %v1347 = vld [vmem:[%s1303 + $0xa8] sm:$0xff]
                  %1348 = vst [vmem:[%s1304 + $0xa8] sm:$0xff] %v1347
                  %v1349 = vld [vmem:[%s1303 + $0xb0] sm:$0xff]
                  %1350 = vst [vmem:[%s1304 + $0xb0] sm:$0xff] %v1349
                  %v1351 = vld [vmem:[%s1303 + $0xb8] sm:$0xff]
                  %1352 = vst [vmem:[%s1304 + $0xb8] sm:$0xff] %v1351
                  %v1353 = vld [vmem:[%s1303 + $0xc0] sm:$0xff]
                  %1354 = vst [vmem:[%s1304 + $0xc0] sm:$0xff] %v1353
                  %v1355 = vld [vmem:[%s1303 + $0xc8] sm:$0xff]
                  %1356 = vst [vmem:[%s1304 + $0xc8] sm:$0xff] %v1355
                  %v1357 = vld [vmem:[%s1303 + $0xd0] sm:$0xff]
                  %1358 = vst [vmem:[%s1304 + $0xd0] sm:$0xff] %v1357
                  %v1359 = vld [vmem:[%s1303 + $0xd8] sm:$0xff]
                  %1360 = vst [vmem:[%s1304 + $0xd8] sm:$0xff] %v1359
                  %v1361 = vld [vmem:[%s1303 + $0xe0] sm:$0xff]
                  %1362 = vst [vmem:[%s1304 + $0xe0] sm:$0xff] %v1361
                  %v1363 = vld [vmem:[%s1303 + $0xe8] sm:$0xff]
                  %1364 = vst [vmem:[%s1304 + $0xe8] sm:$0xff] %v1363
                  %v1365 = vld [vmem:[%s1303 + $0xf0] sm:$0xff]
                  %1366 = vst [vmem:[%s1304 + $0xf0] sm:$0xff] %v1365
                  %v1367 = vld [vmem:[%s1303 + $0xf8] sm:$0xff]
                  %1368 = vst [vmem:[%s1304 + $0xf8] sm:$0xff] %v1367
                  %v1369 = vld [vmem:[%s1303 + $0x100] sm:$0xff]
                  %1370 = vst [vmem:[%s1304 + $0x100] sm:$0xff] %v1369
                  %v1371 = vld [vmem:[%s1303 + $0x108] sm:$0xff]
                  %1372 = vst [vmem:[%s1304 + $0x108] sm:$0xff] %v1371
                  %v1373 = vld [vmem:[%s1303 + $0x110] sm:$0xff]
                  %1374 = vst [vmem:[%s1304 + $0x110] sm:$0xff] %v1373
                  %v1375 = vld [vmem:[%s1303 + $0x118] sm:$0xff]
                  %1376 = vst [vmem:[%s1304 + $0x118] sm:$0xff] %v1375
                  %v1377 = vld [vmem:[%s1303 + $0x120] sm:$0xff]
                  %1378 = vst [vmem:[%s1304 + $0x120] sm:$0xff] %v1377
                  %v1379 = vld [vmem:[%s1303 + $0x128] sm:$0xff]
                  %1380 = vst [vmem:[%s1304 + $0x128] sm:$0xff] %v1379
                  %v1381 = vld [vmem:[%s1303 + $0x130] sm:$0xff]
                  %1382 = vst [vmem:[%s1304 + $0x130] sm:$0xff] %v1381
                  %v1383 = vld [vmem:[%s1303 + $0x138] sm:$0xff]
                  %1384 = vst [vmem:[%s1304 + $0x138] sm:$0xff] %v1383
                  %v1385 = vld [vmem:[%s1303 + $0x140] sm:$0xff]
                  %1386 = vst [vmem:[%s1304 + $0x140] sm:$0xff] %v1385
                  %v1387 = vld [vmem:[%s1303 + $0x148] sm:$0xff]
                  %1388 = vst [vmem:[%s1304 + $0x148] sm:$0xff] %v1387
                  %v1389 = vld [vmem:[%s1303 + $0x150] sm:$0xff]
                  %1390 = vst [vmem:[%s1304 + $0x150] sm:$0xff] %v1389
                  %v1391 = vld [vmem:[%s1303 + $0x158] sm:$0xff]
                  %1392 = vst [vmem:[%s1304 + $0x158] sm:$0xff] %v1391
                  %v1393 = vld [vmem:[%s1303 + $0x160] sm:$0xff]
                  %1394 = vst [vmem:[%s1304 + $0x160] sm:$0xff] %v1393
                  %v1395 = vld [vmem:[%s1303 + $0x168] sm:$0xff]
                  %1396 = vst [vmem:[%s1304 + $0x168] sm:$0xff] %v1395
                  %v1397 = vld [vmem:[%s1303 + $0x170] sm:$0xff]
                  %1398 = vst [vmem:[%s1304 + $0x170] sm:$0xff] %v1397
                  %v1399 = vld [vmem:[%s1303 + $0x178] sm:$0xff]
                  %1400 = vst [vmem:[%s1304 + $0x178] sm:$0xff] %v1399
                  %v1401 = vld [vmem:[%s1303 + $0x180] sm:$0xff]
                  %1402 = vst [vmem:[%s1304 + $0x180] sm:$0xff] %v1401
                  %v1403 = vld [vmem:[%s1303 + $0x188] sm:$0xff]
                  %1404 = vst [vmem:[%s1304 + $0x188] sm:$0xff] %v1403
                  %v1405 = vld [vmem:[%s1303 + $0x190] sm:$0xff]
                  %1406 = vst [vmem:[%s1304 + $0x190] sm:$0xff] %v1405
                  %v1407 = vld [vmem:[%s1303 + $0x198] sm:$0xff]
                  %1408 = vst [vmem:[%s1304 + $0x198] sm:$0xff] %v1407
                  %v1409 = vld [vmem:[%s1303 + $0x1a0] sm:$0xff]
                  %1410 = vst [vmem:[%s1304 + $0x1a0] sm:$0xff] %v1409
                  %v1411 = vld [vmem:[%s1303 + $0x1a8] sm:$0xff]
                  %1412 = vst [vmem:[%s1304 + $0x1a8] sm:$0xff] %v1411
                  %v1413 = vld [vmem:[%s1303 + $0x1b0] sm:$0xff]
                  %1414 = vst [vmem:[%s1304 + $0x1b0] sm:$0xff] %v1413
                  %v1415 = vld [vmem:[%s1303 + $0x1b8] sm:$0xff]
                  %1416 = vst [vmem:[%s1304 + $0x1b8] sm:$0xff] %v1415
                  %v1417 = vld [vmem:[%s1303 + $0x1c0] sm:$0xff]
                  %1418 = vst [vmem:[%s1304 + $0x1c0] sm:$0xff] %v1417
                  %v1419 = vld [vmem:[%s1303 + $0x1c8] sm:$0xff]
                  %1420 = vst [vmem:[%s1304 + $0x1c8] sm:$0xff] %v1419
                  %v1421 = vld [vmem:[%s1303 + $0x1d0] sm:$0xff]
                  %1422 = vst [vmem:[%s1304 + $0x1d0] sm:$0xff] %v1421
                  %v1423 = vld [vmem:[%s1303 + $0x1d8] sm:$0xff]
                  %1424 = vst [vmem:[%s1304 + $0x1d8] sm:$0xff] %v1423
                  %v1425 = vld [vmem:[%s1303 + $0x1e0] sm:$0xff]
                  %1426 = vst [vmem:[%s1304 + $0x1e0] sm:$0xff] %v1425
                  %v1427 = vld [vmem:[%s1303 + $0x1e8] sm:$0xff]
                  %1428 = vst [vmem:[%s1304 + $0x1e8] sm:$0xff] %v1427
                  %v1429 = vld [vmem:[%s1303 + $0x1f0] sm:$0xff]
                  %1430 = vst [vmem:[%s1304 + $0x1f0] sm:$0xff] %v1429
                  %v1431 = vld [vmem:[%s1303 + $0x1f8] sm:$0xff]
                  %1432 = vst [vmem:[%s1304 + $0x1f8] sm:$0xff] %v1431
                  %s1433 = sadd.s32 1, %s1302
                  %p1434 = scmp.ge.s32.totalorder %s1433, %s1295
                  %s1435 = scalar_select %p1434, 0, %s1433
                  %s1436 = smul.u32 %s1435, 512
                  %s1437 = smul.u32 %s1435, 512
                  %s1438 = scalar_lea.vmem %s1103, %s1436 [#allocation2]
                  %s1439 = scalar_lea.vmem %s1114, %s1437
                $region71: #{tpu_custom_call.1} parent=65 // loop_footer
                  %s1299 = sadd.s32 %s1297, 1
                $region72: #{tpu_custom_call.1} parent=65 // loop_footer_branch
                  %1296 = sbr.rel target = $region68
                $region73: #{tpu_custom_call.1} parent=65 // loop_exit
                  _
                %s1440 = sshrl.u32 %s1110, 6
                %s1441 = sand.u32 %s1110, 63
                %s1442 = smul.u32 %s1440, 64
                %s1443 = smul.u32 8, %s1442
                %s1444 = scalar_lea.vmem %s1103, %s1443 [#allocation2]
                %s1445 = smul.u32 8, %s1442
                %s1446 = scalar_lea.vmem %s1114, %s1445
                // While loop
                $region74: #{tpu_custom_call.1} parent=65 // loop_pre_header
                  _
                $region75: #{tpu_custom_call.1} parent=65 // loop_header
                  %s1448 = sphi 0, %s1450
                  %p1449 = scmp.ge.s32.totalorder %s1448, %s1441
                  %s1453 = sphi 0, %s1460
                  %s1454 = sphi %s1444, %s1463
                  %s1455 = sphi %s1446, %s1464
                $region76: #{tpu_custom_call.1} parent=65 // loop_header_branch
                  %1452 = sbr.rel (%p1449) target = $region80
                $region77: #{tpu_custom_call.1} parent=65 // loop_body
                  %v1456 = vld [vmem:[%s1454] sm:$0xff]
                  %1457 = vst [vmem:[%s1455] sm:$0xff] %v1456
                  %s1458 = sadd.s32 1, %s1453
                  %p1459 = scmp.ge.s32.totalorder %s1458, %s1441
                  %s1460 = scalar_select %p1459, 0, %s1458
                  %s1461 = smul.u32 %s1460, 8
                  %s1462 = smul.u32 %s1460, 8
                  %s1463 = scalar_lea.vmem %s1444, %s1461 [#allocation2]
                  %s1464 = scalar_lea.vmem %s1446, %s1462
                $region78: #{tpu_custom_call.1} parent=65 // loop_footer
                  %s1450 = sadd.s32 %s1448, 1
                $region79: #{tpu_custom_call.1} parent=65 // loop_footer_branch
                  %1447 = sbr.rel target = $region75
                $region80: #{tpu_custom_call.1} parent=65 // loop_exit
                  _
              $region66: #{tpu_custom_call.1} parent=43 // pred_fallthru
                _
              // Predicated region
              $region81: #{tpu_custom_call.1} parent=43 // pred_check
                _
              $region82: #{tpu_custom_call.1} parent=43 // pred_check_branch
                %1466 = sbr.rel target = $region84
              $region83: #{tpu_custom_call.1} parent=43 // pred_region
                _
              $region84: #{tpu_custom_call.1} parent=43 // pred_fallthru
                _
            $region44: #{tpu_custom_call.1} parent=39 // pred_fallthru
              _
            // Predicated region
            $region45: #{tpu_custom_call.1} parent=39 // pred_check
              _
            $region46: #{tpu_custom_call.1} parent=39 // pred_check_branch
              %1121 = sbr.rel target = $region48
            $region47: #{tpu_custom_call.1} parent=39 // pred_region
              %s1123 = sshrl.u32 %s1110, 6
              // While loop
              $region49: #{tpu_custom_call.1} parent=47 // loop_pre_header
                _
              $region50: #{tpu_custom_call.1} parent=47 // loop_header
                %s1125 = sphi 0, %s1127
                %p1126 = scmp.ge.s32.totalorder %s1125, %s1123
                %s1130 = sphi 0, %s1263
                %s1131 = sphi %s1103, %s1266
                %s1132 = sphi %s1114, %s1267
              $region51: #{tpu_custom_call.1} parent=47 // loop_header_branch
                %1129 = sbr.rel (%p1126) target = $region55
              $region52: #{tpu_custom_call.1} parent=47 // loop_body
                %v1133 = vld [vmem:[%s1131] sm:$0xff]
                %1134 = vst [vmem:[%s1132] sm:$0xff] %v1133
                %v1135 = vld [vmem:[%s1131 + $0x8] sm:$0xff]
                %1136 = vst [vmem:[%s1132 + $0x8] sm:$0xff] %v1135
                %v1137 = vld [vmem:[%s1131 + $0x10] sm:$0xff]
                %1138 = vst [vmem:[%s1132 + $0x10] sm:$0xff] %v1137
                %v1139 = vld [vmem:[%s1131 + $0x18] sm:$0xff]
                %1140 = vst [vmem:[%s1132 + $0x18] sm:$0xff] %v1139
                %v1141 = vld [vmem:[%s1131 + $0x20] sm:$0xff]
                %1142 = vst [vmem:[%s1132 + $0x20] sm:$0xff] %v1141
                %v1143 = vld [vmem:[%s1131 + $0x28] sm:$0xff]
                %1144 = vst [vmem:[%s1132 + $0x28] sm:$0xff] %v1143
                %v1145 = vld [vmem:[%s1131 + $0x30] sm:$0xff]
                %1146 = vst [vmem:[%s1132 + $0x30] sm:$0xff] %v1145
                %v1147 = vld [vmem:[%s1131 + $0x38] sm:$0xff]
                %1148 = vst [vmem:[%s1132 + $0x38] sm:$0xff] %v1147
                %v1149 = vld [vmem:[%s1131 + $0x40] sm:$0xff]
                %1150 = vst [vmem:[%s1132 + $0x40] sm:$0xff] %v1149
                %v1151 = vld [vmem:[%s1131 + $0x48] sm:$0xff]
                %1152 = vst [vmem:[%s1132 + $0x48] sm:$0xff] %v1151
                %v1153 = vld [vmem:[%s1131 + $0x50] sm:$0xff]
                %1154 = vst [vmem:[%s1132 + $0x50] sm:$0xff] %v1153
                %v1155 = vld [vmem:[%s1131 + $0x58] sm:$0xff]
                %1156 = vst [vmem:[%s1132 + $0x58] sm:$0xff] %v1155
                %v1157 = vld [vmem:[%s1131 + $0x60] sm:$0xff]
                %1158 = vst [vmem:[%s1132 + $0x60] sm:$0xff] %v1157
                %v1159 = vld [vmem:[%s1131 + $0x68] sm:$0xff]
                %1160 = vst [vmem:[%s1132 + $0x68] sm:$0xff] %v1159
                %v1161 = vld [vmem:[%s1131 + $0x70] sm:$0xff]
                %1162 = vst [vmem:[%s1132 + $0x70] sm:$0xff] %v1161
                %v1163 = vld [vmem:[%s1131 + $0x78] sm:$0xff]
                %1164 = vst [vmem:[%s1132 + $0x78] sm:$0xff] %v1163
                %v1165 = vld [vmem:[%s1131 + $0x80] sm:$0xff]
                %1166 = vst [vmem:[%s1132 + $0x80] sm:$0xff] %v1165
                %v1167 = vld [vmem:[%s1131 + $0x88] sm:$0xff]
                %1168 = vst [vmem:[%s1132 + $0x88] sm:$0xff] %v1167
                %v1169 = vld [vmem:[%s1131 + $0x90] sm:$0xff]
                %1170 = vst [vmem:[%s1132 + $0x90] sm:$0xff] %v1169
                %v1171 = vld [vmem:[%s1131 + $0x98] sm:$0xff]
                %1172 = vst [vmem:[%s1132 + $0x98] sm:$0xff] %v1171
                %v1173 = vld [vmem:[%s1131 + $0xa0] sm:$0xff]
                %1174 = vst [vmem:[%s1132 + $0xa0] sm:$0xff] %v1173
                %v1175 = vld [vmem:[%s1131 + $0xa8] sm:$0xff]
                %1176 = vst [vmem:[%s1132 + $0xa8] sm:$0xff] %v1175
                %v1177 = vld [vmem:[%s1131 + $0xb0] sm:$0xff]
                %1178 = vst [vmem:[%s1132 + $0xb0] sm:$0xff] %v1177
                %v1179 = vld [vmem:[%s1131 + $0xb8] sm:$0xff]
                %1180 = vst [vmem:[%s1132 + $0xb8] sm:$0xff] %v1179
                %v1181 = vld [vmem:[%s1131 + $0xc0] sm:$0xff]
                %1182 = vst [vmem:[%s1132 + $0xc0] sm:$0xff] %v1181
                %v1183 = vld [vmem:[%s1131 + $0xc8] sm:$0xff]
                %1184 = vst [vmem:[%s1132 + $0xc8] sm:$0xff] %v1183
                %v1185 = vld [vmem:[%s1131 + $0xd0] sm:$0xff]
                %1186 = vst [vmem:[%s1132 + $0xd0] sm:$0xff] %v1185
                %v1187 = vld [vmem:[%s1131 + $0xd8] sm:$0xff]
                %1188 = vst [vmem:[%s1132 + $0xd8] sm:$0xff] %v1187
                %v1189 = vld [vmem:[%s1131 + $0xe0] sm:$0xff]
                %1190 = vst [vmem:[%s1132 + $0xe0] sm:$0xff] %v1189
                %v1191 = vld [vmem:[%s1131 + $0xe8] sm:$0xff]
                %1192 = vst [vmem:[%s1132 + $0xe8] sm:$0xff] %v1191
                %v1193 = vld [vmem:[%s1131 + $0xf0] sm:$0xff]
                %1194 = vst [vmem:[%s1132 + $0xf0] sm:$0xff] %v1193
                %v1195 = vld [vmem:[%s1131 + $0xf8] sm:$0xff]
                %1196 = vst [vmem:[%s1132 + $0xf8] sm:$0xff] %v1195
                %v1197 = vld [vmem:[%s1131 + $0x100] sm:$0xff]
                %1198 = vst [vmem:[%s1132 + $0x100] sm:$0xff] %v1197
                %v1199 = vld [vmem:[%s1131 + $0x108] sm:$0xff]
                %1200 = vst [vmem:[%s1132 + $0x108] sm:$0xff] %v1199
                %v1201 = vld [vmem:[%s1131 + $0x110] sm:$0xff]
                %1202 = vst [vmem:[%s1132 + $0x110] sm:$0xff] %v1201
                %v1203 = vld [vmem:[%s1131 + $0x118] sm:$0xff]
                %1204 = vst [vmem:[%s1132 + $0x118] sm:$0xff] %v1203
                %v1205 = vld [vmem:[%s1131 + $0x120] sm:$0xff]
                %1206 = vst [vmem:[%s1132 + $0x120] sm:$0xff] %v1205
                %v1207 = vld [vmem:[%s1131 + $0x128] sm:$0xff]
                %1208 = vst [vmem:[%s1132 + $0x128] sm:$0xff] %v1207
                %v1209 = vld [vmem:[%s1131 + $0x130] sm:$0xff]
                %1210 = vst [vmem:[%s1132 + $0x130] sm:$0xff] %v1209
                %v1211 = vld [vmem:[%s1131 + $0x138] sm:$0xff]
                %1212 = vst [vmem:[%s1132 + $0x138] sm:$0xff] %v1211
                %v1213 = vld [vmem:[%s1131 + $0x140] sm:$0xff]
                %1214 = vst [vmem:[%s1132 + $0x140] sm:$0xff] %v1213
                %v1215 = vld [vmem:[%s1131 + $0x148] sm:$0xff]
                %1216 = vst [vmem:[%s1132 + $0x148] sm:$0xff] %v1215
                %v1217 = vld [vmem:[%s1131 + $0x150] sm:$0xff]
                %1218 = vst [vmem:[%s1132 + $0x150] sm:$0xff] %v1217
                %v1219 = vld [vmem:[%s1131 + $0x158] sm:$0xff]
                %1220 = vst [vmem:[%s1132 + $0x158] sm:$0xff] %v1219
                %v1221 = vld [vmem:[%s1131 + $0x160] sm:$0xff]
                %1222 = vst [vmem:[%s1132 + $0x160] sm:$0xff] %v1221
                %v1223 = vld [vmem:[%s1131 + $0x168] sm:$0xff]
                %1224 = vst [vmem:[%s1132 + $0x168] sm:$0xff] %v1223
                %v1225 = vld [vmem:[%s1131 + $0x170] sm:$0xff]
                %1226 = vst [vmem:[%s1132 + $0x170] sm:$0xff] %v1225
                %v1227 = vld [vmem:[%s1131 + $0x178] sm:$0xff]
                %1228 = vst [vmem:[%s1132 + $0x178] sm:$0xff] %v1227
                %v1229 = vld [vmem:[%s1131 + $0x180] sm:$0xff]
                %1230 = vst [vmem:[%s1132 + $0x180] sm:$0xff] %v1229
                %v1231 = vld [vmem:[%s1131 + $0x188] sm:$0xff]
                %1232 = vst [vmem:[%s1132 + $0x188] sm:$0xff] %v1231
                %v1233 = vld [vmem:[%s1131 + $0x190] sm:$0xff]
                %1234 = vst [vmem:[%s1132 + $0x190] sm:$0xff] %v1233
                %v1235 = vld [vmem:[%s1131 + $0x198] sm:$0xff]
                %1236 = vst [vmem:[%s1132 + $0x198] sm:$0xff] %v1235
                %v1237 = vld [vmem:[%s1131 + $0x1a0] sm:$0xff]
                %1238 = vst [vmem:[%s1132 + $0x1a0] sm:$0xff] %v1237
                %v1239 = vld [vmem:[%s1131 + $0x1a8] sm:$0xff]
                %1240 = vst [vmem:[%s1132 + $0x1a8] sm:$0xff] %v1239
                %v1241 = vld [vmem:[%s1131 + $0x1b0] sm:$0xff]
                %1242 = vst [vmem:[%s1132 + $0x1b0] sm:$0xff] %v1241
                %v1243 = vld [vmem:[%s1131 + $0x1b8] sm:$0xff]
                %1244 = vst [vmem:[%s1132 + $0x1b8] sm:$0xff] %v1243
                %v1245 = vld [vmem:[%s1131 + $0x1c0] sm:$0xff]
                %1246 = vst [vmem:[%s1132 + $0x1c0] sm:$0xff] %v1245
                %v1247 = vld [vmem:[%s1131 + $0x1c8] sm:$0xff]
                %1248 = vst [vmem:[%s1132 + $0x1c8] sm:$0xff] %v1247
                %v1249 = vld [vmem:[%s1131 + $0x1d0] sm:$0xff]
                %1250 = vst [vmem:[%s1132 + $0x1d0] sm:$0xff] %v1249
                %v1251 = vld [vmem:[%s1131 + $0x1d8] sm:$0xff]
                %1252 = vst [vmem:[%s1132 + $0x1d8] sm:$0xff] %v1251
                %v1253 = vld [vmem:[%s1131 + $0x1e0] sm:$0xff]
                %1254 = vst [vmem:[%s1132 + $0x1e0] sm:$0xff] %v1253
                %v1255 = vld [vmem:[%s1131 + $0x1e8] sm:$0xff]
                %1256 = vst [vmem:[%s1132 + $0x1e8] sm:$0xff] %v1255
                %v1257 = vld [vmem:[%s1131 + $0x1f0] sm:$0xff]
                %1258 = vst [vmem:[%s1132 + $0x1f0] sm:$0xff] %v1257
                %v1259 = vld [vmem:[%s1131 + $0x1f8] sm:$0xff]
                %1260 = vst [vmem:[%s1132 + $0x1f8] sm:$0xff] %v1259
                %s1261 = sadd.s32 1, %s1130
                %p1262 = scmp.ge.s32.totalorder %s1261, %s1123
                %s1263 = scalar_select %p1262, 0, %s1261
                %s1264 = smul.u32 %s1263, 512
                %s1265 = smul.u32 %s1263, 512
                %s1266 = scalar_lea.vmem %s1103, %s1264 [#allocation2]
                %s1267 = scalar_lea.vmem %s1114, %s1265
              $region53: #{tpu_custom_call.1} parent=47 // loop_footer
                %s1127 = sadd.s32 %s1125, 1
              $region54: #{tpu_custom_call.1} parent=47 // loop_footer_branch
                %1124 = sbr.rel target = $region50
              $region55: #{tpu_custom_call.1} parent=47 // loop_exit
                _
              %s1268 = sshrl.u32 %s1110, 6
              %s1269 = sand.u32 %s1110, 63
              %s1270 = smul.u32 %s1268, 64
              %s1271 = smul.u32 8, %s1270
              %s1272 = scalar_lea.vmem %s1103, %s1271 [#allocation2]
              %s1273 = smul.u32 8, %s1270
              %s1274 = scalar_lea.vmem %s1114, %s1273
              // While loop
              $region56: #{tpu_custom_call.1} parent=47 // loop_pre_header
                _
              $region57: #{tpu_custom_call.1} parent=47 // loop_header
                %s1276 = sphi 0, %s1278
                %p1277 = scmp.ge.s32.totalorder %s1276, %s1269
                %s1281 = sphi 0, %s1288
                %s1282 = sphi %s1272, %s1291
                %s1283 = sphi %s1274, %s1292
              $region58: #{tpu_custom_call.1} parent=47 // loop_header_branch
                %1280 = sbr.rel (%p1277) target = $region62
              $region59: #{tpu_custom_call.1} parent=47 // loop_body
                %v1284 = vld [vmem:[%s1282] sm:$0xff]
                %1285 = vst [vmem:[%s1283] sm:$0xff] %v1284
                %s1286 = sadd.s32 1, %s1281
                %p1287 = scmp.ge.s32.totalorder %s1286, %s1269
                %s1288 = scalar_select %p1287, 0, %s1286
                %s1289 = smul.u32 %s1288, 8
                %s1290 = smul.u32 %s1288, 8
                %s1291 = scalar_lea.vmem %s1272, %s1289 [#allocation2]
                %s1292 = scalar_lea.vmem %s1274, %s1290
              $region60: #{tpu_custom_call.1} parent=47 // loop_footer
                %s1278 = sadd.s32 %s1276, 1
              $region61: #{tpu_custom_call.1} parent=47 // loop_footer_branch
                %1275 = sbr.rel target = $region57
              $region62: #{tpu_custom_call.1} parent=47 // loop_exit
                _
            $region48: #{tpu_custom_call.1} parent=39 // pred_fallthru
              _
          $region40: #{tpu_custom_call.1} parent=35 // pred_fallthru
            _
          %1467 = vnop
        $region36: #{tpu_custom_call.1} parent=31 // pred_fallthru
          _
      $region32: #{tpu_custom_call.1} parent=5 // pred_fallthru
        _
      %p1468 = scmp.le.s32.totalorder 2, %s9
      // Predicated region
      $region85: #{tpu_custom_call.1} parent=5 // pred_check
        %p1469 = pneg %p1468
      $region86: #{tpu_custom_call.1} parent=5 // pred_check_branch
        %1471 = sbr.rel (%p1469) target = $region88
      $region87: #{tpu_custom_call.1} parent=5 // pred_region
        %s1472 = ssub.s32 %s9, 2
        // Predicated region
        $region89: #{tpu_custom_call.1} parent=87 // pred_check
          %p1473 = pneg %p106
        $region90: #{tpu_custom_call.1} parent=87 // pred_check_branch
          %1475 = sbr.rel (%p1473) target = $region92
        $region91: #{tpu_custom_call.1} parent=87 // pred_region
          %s1476 = sand.u32 %s91, 1
          %s1477 = sand.u32 %s91, 1
          %s1478 = smul.addr %s1477, 512
          %s1479 = scalar_lea.vmem [#allocation2], %s1478
        $region92: #{tpu_custom_call.1} parent=87 // pred_fallthru
          _
      $region88: #{tpu_custom_call.1} parent=5 // pred_fallthru
        _
    $region6: #{tpu_custom_call.1} parent=1 // loop_footer
      %s13 = sadd.s32 1, %s9
    $region7: #{tpu_custom_call.1} parent=1 // loop_footer_branch
      %8 = sbr.rel target = $region3
    $region8: #{tpu_custom_call.1} parent=1 // loop_exit
      _

</llo_original>
